<compile_context>
chip_gen: v7x
topology: tpu7x:2x2x1
jax: 0.10.0
libtpu: 0.0.40
codegen_flags: <defaults>
</compile_context>

<pallas_src>
import jax
import jax.numpy as jnp
from jax.experimental import pallas as pl
from jax.experimental.pallas import tpu as pltpu


_LANE = 128
_SUBLANE = 8


def _log_sigmoid(x):
    # Numerically stable log(sigmoid(x)) = min(x, 0) - log1p(exp(-|x|))
    return jnp.minimum(x, 0.0) - jnp.log1p(jnp.exp(-jnp.abs(x)))


def _make_kernel(block_b: int, num_ctx: int, vp: int, b_total: int):
    """block_b batch rows per grid step; num_ctx = 1 positive + K negatives."""

    def kernel(idx_ref, tbl1_ref, tbl2_ref, out_ref):
        blk = pl.program_id(0)

        idx = idx_ref[...]                                            # (BB, 1+num_ctx) i32
        iota_v = jax.lax.broadcasted_iota(jnp.int32, (block_b, vp), 1)

        # ---- vectorized gather: one-hot MXU matmul (replaces 8*(1+K) sublane slices).
        onehot_c = (idx[:, 0:1] == iota_v).astype(tbl1_ref.dtype)     # (BB, Vp)
        vi = jnp.dot(onehot_c, tbl1_ref[...],
                     preferred_element_type=jnp.float32)              # (BB, Dp) f32

        tbl2 = tbl2_ref[...]                                          # hoisted table read
        total = jnp.zeros((block_b, 1), jnp.float32)
        for c in range(num_ctx):                                      # small static unroll
            onehot = (idx[:, c + 1:c + 2] == iota_v).astype(tbl2.dtype)
            u = jnp.dot(onehot, tbl2,
                        preferred_element_type=jnp.float32)           # (BB, Dp) f32
            dots = jnp.sum(vi * u, axis=-1, keepdims=True)            # (BB, 1)
            # column 1 of the batch is the positive sample; negatives flip the scalar.
            signed = dots if c == 0 else -dots
            total = total + _log_sigmoid(signed)

        # mask batch rows added by padding up to a multiple of block_b
        row = blk * block_b + jax.lax.broadcasted_iota(jnp.int32, (block_b, 1), 0)
        total = jnp.where(row < b_total, total, 0.0)

        # single lane-dense write of this block's partial loss sum
        out_ref[...] = jnp.full(out_ref.shape, jnp.sum(total), dtype=out_ref.dtype)

    return kernel


def skipw2v_loss(batch_idx, first_table, second_table, *,
                 block_b: int = 128, table_dtype=jnp.float32):
    """Pallas forward pass of SkipW2V. Returns the scalar loss (-mean(pos + neg))."""
    B, C = batch_idx.shape
    V, D = first_table.shape
    num_ctx = C - 1                           # 1 positive + K negatives

    tbl_dtype = jnp.dtype(table_dtype)        # bf16 halves VMEM/HBM bytes (v6e/v7x)
    first = first_table.astype(tbl_dtype)
    second = second_table.astype(tbl_dtype)

    # Lane-dense embedding dim: pad D up to a multiple of 128 with zeros.
    d_pad = (-D) % _LANE
    if d_pad:
        first = jnp.pad(first, ((0, 0), (0, d_pad)))
        second = jnp.pad(second, ((0, 0), (0, d_pad)))
    Dp = D + d_pad

    # Sublane-align the vocab (one-hot contraction) axis.
    v_pad = (-V) % _SUBLANE
    if v_pad:
        first = jnp.pad(first, ((0, v_pad), (0, 0)))
        second = jnp.pad(second, ((0, v_pad), (0, 0)))
    Vp = V + v_pad

    # block_b: multiple of 8, clamped so tiny batches don't do 16x padded work.
    block_b = max(_SUBLANE, min(int(block_b), B + ((-B) % _SUBLANE)))
    block_b = block_b + ((-block_b) % _SUBLANE)
    num_blocks = pl.cdiv(B, block_b)
    b_pad = num_blocks * block_b

    idx = batch_idx.astype(jnp.int32)
    if b_pad > B:
        idx = jnp.pad(idx, ((0, b_pad - B), (0, 0)))   # padded rows masked in-kernel

    kernel = _make_kernel(block_b, num_ctx, Vp, B)

    # VMEM budget: single-buffered tables (Buffered(1)) + headroom, capped at the
    # actual device capacity (64 MiB/TC on v7x, 128 MiB on v5e/v6e).
    try:
        vmem_cap = int(pltpu.get_tpu_info().vmem_capacity_bytes)
    except Exception:
        vmem_cap = 64 << 20
    table_bytes = 2 * Vp * Dp * tbl_dtype.itemsize
    vmem_limit = int(min(vmem_cap, max(16 << 20, table_bytes + (8 << 20))))

    out = pl.pallas_call(
        kernel,
        out_shape=jax.ShapeDtypeStruct((num_blocks, _SUBLANE, _LANE), jnp.float32),
        grid_spec=pltpu.PrefetchScalarGridSpec(
            num_scalar_prefetch=0,
            grid=(num_blocks,),
            in_specs=[
                # per-block indices as a normal blocked int32 VMEM input
                pl.BlockSpec((block_b, C), lambda blk: (blk, 0)),
                # tables: constant block -> single-buffered VMEM residents
                pl.BlockSpec((Vp, Dp), lambda blk: (0, 0),
                             pipeline_mode=pl.Buffered(1)),
                pl.BlockSpec((Vp, Dp), lambda blk: (0, 0),
                             pipeline_mode=pl.Buffered(1)),
            ],
            out_specs=pl.BlockSpec(
                (1, _SUBLANE, _LANE), lambda blk: (blk, 0, 0)
            ),
        ),
        compiler_params=pltpu.CompilerParams(
            # TODO(synk): pltpu.CORE_PARALLEL here on v7x to use the second TensorCore.
            dimension_semantics=("parallel",),
            vmem_limit_bytes=vmem_limit,
        ),
    )(idx, first, second)

    partials = out[:, 0, 0]                    # (num_blocks,)
    return -jnp.sum(partials) / B


def skipw2v_loss_ref(batch_idx, first_table, second_table):
    """Pure-JAX reference matching the PyTorch forward exactly."""
    v_i = first_table[batch_idx[:, 0]]                    # (B, D)
    v_j = second_table[batch_idx[:, 1]]                   # (B, D)
    v_neg = -second_table[batch_idx[:, 2:]]               # (B, K, D)
    pos = jax.nn.log_sigmoid(jnp.sum(v_i * v_j, axis=1))  # (B,)
    neg = jnp.sum(
        jax.nn.log_sigmoid(jnp.sum(v_i[:, None, :] * v_neg, axis=2)), axis=1
    )                                                     # (B,)
    return -jnp.mean(pos + neg)


if __name__ == "__main__":
    VOC_SIZE = 64
    EMBED_DIM = 32
    BATCH = 200        # > block_b -> multiple grid blocks + partial-block masking tested
    NUM_NEG = 3        # batch columns: [center, positive, neg_0, neg_1, neg_2]

    key = jax.random.PRNGKey(0)
    k_t1, k_t2, k_idx = jax.random.split(key, 3)

    # Weights: uniform(-0.5, 0.5) / embed_dim (as in the module's __init__).
    first_table = (
        jax.random.uniform(k_t1, (VOC_SIZE, EMBED_DIM), jnp.float32, -0.5, 0.5)
        / EMBED_DIM
    )
    second_table = (
        jax.random.uniform(k_t2, (VOC_SIZE, EMBED_DIM), jnp.float32, -0.5, 0.5)
        / EMBED_DIM
    )

    # Integer "batch": (B, 2 + NUM_NEG) word indices.
    batch_idx = jax.random.randint(
        k_idx, (BATCH, 2 + NUM_NEG), minval=0, maxval=VOC_SIZE, dtype=jnp.int32
    )

    loss = skipw2v_loss(batch_idx, first_table, second_table)
    loss = jax.block_until_ready(loss)

    loss_ref = skipw2v_loss_ref(batch_idx, first_table, second_table)
    if not jnp.allclose(loss, loss_ref, atol=1e-5, rtol=2e-5):
        raise AssertionError(f"mismatch: pallas={loss} ref={loss_ref}")

    print("KERNEL_OK")
</pallas_src>

<mosaic_0001>
module attributes {stable_mosaic.version = 11 : i64} {
  func.func @kernel(%arg0: i32, %arg1: memref<128x5xi32, #tpu.memory_space<vmem>>, %arg2: memref<64x128xf32, #tpu.memory_space<vmem>>, %arg3: memref<64x128xf32, #tpu.memory_space<vmem>>, %arg4: memref<1x8x128xf32, #tpu.memory_space<vmem>>) attributes {dimension_semantics = [#tpu.dimension_semantics<parallel>], iteration_bounds = array<i64: 2>, scalar_prefetch = 0 : i64, scratch_operands = 0 : i64, tpu.core_type = #tpu.core_type<tc>, window_params = [{transform_indices = @transform_0, window_bounds = array<i64: 128, 5>}, {pipeline_mode = #tpu.pipeline_mode<synchronous>, transform_indices = @transform_1, window_bounds = array<i64: 64, 128>}, {pipeline_mode = #tpu.pipeline_mode<synchronous>, transform_indices = @transform_2, window_bounds = array<i64: 64, 128>}, {transform_indices = @transform_3, window_bounds = array<i64: 1, 8, 128>}]} {
    %c0 = arith.constant 0 : index
    %c0_0 = arith.constant 0 : index
    %0 = vector.load %arg1[%c0, %c0_0] : memref<128x5xi32, #tpu.memory_space<vmem>>, vector<128x5xi32>
    %1 = tpu.iota {dimensions = array<i32: 1>} : vector<128x64xi32>
    %2 = vector.extract_strided_slice %0 {offsets = [0, 0], sizes = [128, 1], strides = [1, 1]} : vector<128x5xi32> to vector<128x1xi32>
    %3 = vector.broadcast %2 : vector<128x1xi32> to vector<128x64xi32>
    %4 = arith.cmpi eq, %3, %1 : vector<128x64xi32>
    %5 = arith.extui %4 : vector<128x64xi1> to vector<128x64xi32>
    %6 = arith.sitofp %5 : vector<128x64xi32> to vector<128x64xf32>
    %c0_1 = arith.constant 0 : index
    %c0_2 = arith.constant 0 : index
    %7 = vector.load %arg2[%c0_1, %c0_2] : memref<64x128xf32, #tpu.memory_space<vmem>>, vector<64x128xf32>
    %cst = arith.constant dense<0.000000e+00> : vector<128x128xf32>
    %8 = tpu.matmul %6, %7, %cst {dimension_numbers = #tpu.dot_dimension_numbers<[1], [0], [0], [1], [0, 0, 1, 1], [], []>} : vector<128x64xf32>, vector<64x128xf32>, vector<128x128xf32> -> vector<128x128xf32>
    %c0_3 = arith.constant 0 : index
    %c0_4 = arith.constant 0 : index
    %9 = vector.load %arg3[%c0_3, %c0_4] : memref<64x128xf32, #tpu.memory_space<vmem>>, vector<64x128xf32>
    %cst_5 = arith.constant 0.000000e+00 : f32
    %10 = vector.broadcast %cst_5 : f32 to vector<128x1xf32>
    %11 = vector.extract_strided_slice %0 {offsets = [0, 1], sizes = [128, 1], strides = [1, 1]} : vector<128x5xi32> to vector<128x1xi32>
    %12 = vector.broadcast %11 : vector<128x1xi32> to vector<128x64xi32>
    %13 = arith.cmpi eq, %12, %1 : vector<128x64xi32>
    %14 = arith.extui %13 : vector<128x64xi1> to vector<128x64xi32>
    %15 = arith.sitofp %14 : vector<128x64xi32> to vector<128x64xf32>
    %cst_6 = arith.constant dense<0.000000e+00> : vector<128x128xf32>
    %16 = tpu.matmul %15, %9, %cst_6 {dimension_numbers = #tpu.dot_dimension_numbers<[1], [0], [0], [1], [0, 0, 1, 1], [], []>} : vector<128x64xf32>, vector<64x128xf32>, vector<128x128xf32> -> vector<128x128xf32>
    %17 = arith.mulf %8, %16 : vector<128x128xf32>
    %cst_7 = arith.constant dense<0.000000e+00> : vector<128xf32>
    %18 = vector.multi_reduction <add>, %17, %cst_7 [1] : vector<128x128xf32> to vector<128xf32>
    %19 = vector.shape_cast %18 : vector<128xf32> to vector<128x1xf32>
    %cst_8 = arith.constant 0.000000e+00 : f32
    %20 = vector.broadcast %cst_8 : f32 to vector<128x1xf32>
    %21 = arith.minimumf %19, %20 : vector<128x1xf32>
    %22 = math.absf %19 : vector<128x1xf32>
    %cst_9 = arith.constant 0.000000e+00 : f32
    %23 = vector.broadcast %cst_9 : f32 to vector<128x1xf32>
    %24 = arith.subf %23, %22 : vector<128x1xf32>
    %25 = math.exp %24 : vector<128x1xf32>
    %26 = math.log1p %25 : vector<128x1xf32>
    %27 = arith.subf %21, %26 : vector<128x1xf32>
    %28 = arith.addf %10, %27 : vector<128x1xf32>
    %29 = vector.extract_strided_slice %0 {offsets = [0, 2], sizes = [128, 1], strides = [1, 1]} : vector<128x5xi32> to vector<128x1xi32>
    %30 = vector.broadcast %29 : vector<128x1xi32> to vector<128x64xi32>
    %31 = arith.cmpi eq, %30, %1 : vector<128x64xi32>
    %32 = arith.extui %31 : vector<128x64xi1> to vector<128x64xi32>
    %33 = arith.sitofp %32 : vector<128x64xi32> to vector<128x64xf32>
    %cst_10 = arith.constant dense<0.000000e+00> : vector<128x128xf32>
    %34 = tpu.matmul %33, %9, %cst_10 {dimension_numbers = #tpu.dot_dimension_numbers<[1], [0], [0], [1], [0, 0, 1, 1], [], []>} : vector<128x64xf32>, vector<64x128xf32>, vector<128x128xf32> -> vector<128x128xf32>
    %35 = arith.mulf %8, %34 : vector<128x128xf32>
    %cst_11 = arith.constant dense<0.000000e+00> : vector<128xf32>
    %36 = vector.multi_reduction <add>, %35, %cst_11 [1] : vector<128x128xf32> to vector<128xf32>
    %37 = vector.shape_cast %36 : vector<128xf32> to vector<128x1xf32>
    %cst_12 = arith.constant 0.000000e+00 : f32
    %38 = vector.broadcast %cst_12 : f32 to vector<128x1xf32>
    %39 = arith.subf %38, %37 : vector<128x1xf32>
    %cst_13 = arith.constant 0.000000e+00 : f32
    %40 = vector.broadcast %cst_13 : f32 to vector<128x1xf32>
    %41 = arith.minimumf %39, %40 : vector<128x1xf32>
    %42 = math.absf %39 : vector<128x1xf32>
    %cst_14 = arith.constant 0.000000e+00 : f32
    %43 = vector.broadcast %cst_14 : f32 to vector<128x1xf32>
    %44 = arith.subf %43, %42 : vector<128x1xf32>
    %45 = math.exp %44 : vector<128x1xf32>
    %46 = math.log1p %45 : vector<128x1xf32>
    %47 = arith.subf %41, %46 : vector<128x1xf32>
    %48 = arith.addf %28, %47 : vector<128x1xf32>
    %49 = vector.extract_strided_slice %0 {offsets = [0, 3], sizes = [128, 1], strides = [1, 1]} : vector<128x5xi32> to vector<128x1xi32>
    %50 = vector.broadcast %49 : vector<128x1xi32> to vector<128x64xi32>
    %51 = arith.cmpi eq, %50, %1 : vector<128x64xi32>
    %52 = arith.extui %51 : vector<128x64xi1> to vector<128x64xi32>
    %53 = arith.sitofp %52 : vector<128x64xi32> to vector<128x64xf32>
    %cst_15 = arith.constant dense<0.000000e+00> : vector<128x128xf32>
    %54 = tpu.matmul %53, %9, %cst_15 {dimension_numbers = #tpu.dot_dimension_numbers<[1], [0], [0], [1], [0, 0, 1, 1], [], []>} : vector<128x64xf32>, vector<64x128xf32>, vector<128x128xf32> -> vector<128x128xf32>
    %55 = arith.mulf %8, %54 : vector<128x128xf32>
    %cst_16 = arith.constant dense<0.000000e+00> : vector<128xf32>
    %56 = vector.multi_reduction <add>, %55, %cst_16 [1] : vector<128x128xf32> to vector<128xf32>
    %57 = vector.shape_cast %56 : vector<128xf32> to vector<128x1xf32>
    %cst_17 = arith.constant 0.000000e+00 : f32
    %58 = vector.broadcast %cst_17 : f32 to vector<128x1xf32>
    %59 = arith.subf %58, %57 : vector<128x1xf32>
    %cst_18 = arith.constant 0.000000e+00 : f32
    %60 = vector.broadcast %cst_18 : f32 to vector<128x1xf32>
    %61 = arith.minimumf %59, %60 : vector<128x1xf32>
    %62 = math.absf %59 : vector<128x1xf32>
    %cst_19 = arith.constant 0.000000e+00 : f32
    %63 = vector.broadcast %cst_19 : f32 to vector<128x1xf32>
    %64 = arith.subf %63, %62 : vector<128x1xf32>
    %65 = math.exp %64 : vector<128x1xf32>
    %66 = math.log1p %65 : vector<128x1xf32>
    %67 = arith.subf %61, %66 : vector<128x1xf32>
    %68 = arith.addf %48, %67 : vector<128x1xf32>
    %69 = vector.extract_strided_slice %0 {offsets = [0, 4], sizes = [128, 1], strides = [1, 1]} : vector<128x5xi32> to vector<128x1xi32>
    %70 = vector.broadcast %69 : vector<128x1xi32> to vector<128x64xi32>
    %71 = arith.cmpi eq, %70, %1 : vector<128x64xi32>
    %72 = arith.extui %71 : vector<128x64xi1> to vector<128x64xi32>
    %73 = arith.sitofp %72 : vector<128x64xi32> to vector<128x64xf32>
    %cst_20 = arith.constant dense<0.000000e+00> : vector<128x128xf32>
    %74 = tpu.matmul %73, %9, %cst_20 {dimension_numbers = #tpu.dot_dimension_numbers<[1], [0], [0], [1], [0, 0, 1, 1], [], []>} : vector<128x64xf32>, vector<64x128xf32>, vector<128x128xf32> -> vector<128x128xf32>
    %75 = arith.mulf %8, %74 : vector<128x128xf32>
    %cst_21 = arith.constant dense<0.000000e+00> : vector<128xf32>
    %76 = vector.multi_reduction <add>, %75, %cst_21 [1] : vector<128x128xf32> to vector<128xf32>
    %77 = vector.shape_cast %76 : vector<128xf32> to vector<128x1xf32>
    %cst_22 = arith.constant 0.000000e+00 : f32
    %78 = vector.broadcast %cst_22 : f32 to vector<128x1xf32>
    %79 = arith.subf %78, %77 : vector<128x1xf32>
    %cst_23 = arith.constant 0.000000e+00 : f32
    %80 = vector.broadcast %cst_23 : f32 to vector<128x1xf32>
    %81 = arith.minimumf %79, %80 : vector<128x1xf32>
    %82 = math.absf %79 : vector<128x1xf32>
    %cst_24 = arith.constant 0.000000e+00 : f32
    %83 = vector.broadcast %cst_24 : f32 to vector<128x1xf32>
    %84 = arith.subf %83, %82 : vector<128x1xf32>
    %85 = math.exp %84 : vector<128x1xf32>
    %86 = math.log1p %85 : vector<128x1xf32>
    %87 = arith.subf %81, %86 : vector<128x1xf32>
    %88 = arith.addf %68, %87 : vector<128x1xf32>
    %c128_i32 = arith.constant 128 : i32
    %89 = arith.muli %arg0, %c128_i32 : i32
    %90 = tpu.iota {dimensions = array<i32: 0>} : vector<128x1xi32>
    %91 = vector.broadcast %89 : i32 to vector<128x1xi32>
    %92 = arith.addi %91, %90 : vector<128x1xi32>
    %c200_i32 = arith.constant 200 : i32
    %93 = vector.broadcast %c200_i32 : i32 to vector<128x1xi32>
    %94 = arith.cmpi slt, %92, %93 : vector<128x1xi32>
    %cst_25 = arith.constant 0.000000e+00 : f32
    %95 = vector.broadcast %cst_25 : f32 to vector<128x1xf32>
    %96 = arith.select %94, %88, %95 : vector<128x1xi1>, vector<128x1xf32>
    %97 = vector.shape_cast %96 : vector<128x1xf32> to vector<1x128x1xf32>
    %cst_26 = arith.constant dense<0.000000e+00> : vector<1xf32>
    %98 = vector.multi_reduction <add>, %97, %cst_26 [1, 2] : vector<1x128x1xf32> to vector<1xf32>
    %99 = vector.shape_cast %98 : vector<1xf32> to vector<1x1x1xf32>
    %100 = vector.extract %99[0, 0, 0] : f32 from vector<1x1x1xf32>
    %101 = vector.broadcast %100 : f32 to vector<1x8x128xf32>
    %c0_27 = arith.constant 0 : index
    %c0_28 = arith.constant 0 : index
    %c0_29 = arith.constant 0 : index
    %102 = vector.load %arg4[%c0_27, %c0_28, %c0_29] : memref<1x8x128xf32, #tpu.memory_space<vmem>>, vector<1x8x128xf32>
    tpu.vector_store %arg4[%c0_27, %c0_28, %c0_29], %101 {strides = array<i32>} : memref<1x8x128xf32, #tpu.memory_space<vmem>>, vector<1x8x128xf32>,
    return
  }
  func.func @transform_0(%arg0: i32) -> (i32, i32) {
    %c0_i32 = arith.constant 0 : i32
    %c0_i32_0 = arith.constant 0 : i32
    return %arg0, %c0_i32 : i32, i32
  }
  func.func @transform_1(%arg0: i32) -> (i32, i32) {
    %c0_i32 = arith.constant 0 : i32
    %c0_i32_0 = arith.constant 0 : i32
    %c0_i32_1 = arith.constant 0 : i32
    return %c0_i32, %c0_i32_0 : i32, i32
  }
  func.func @transform_2(%arg0: i32) -> (i32, i32) {
    %c0_i32 = arith.constant 0 : i32
    %c0_i32_0 = arith.constant 0 : i32
    %c0_i32_1 = arith.constant 0 : i32
    return %c0_i32, %c0_i32_0 : i32, i32
  }
  func.func @transform_3(%arg0: i32) -> (i32, i32, i32) {
    %c0_i32 = arith.constant 0 : i32
    %c0_i32_0 = arith.constant 0 : i32
    %c0_i32_1 = arith.constant 0 : i32
    return %arg0, %c0_i32, %c0_i32_0 : i32, i32, i32
  }
}

</mosaic_0001>

<llo_original>
// kernel: tpu_custom_call.1
$region0: #{tpu_custom_call.1}
  #allocation0 [shape = 'u32[]', space=smem, size = 0x4, offset = 0x4, fixed_abs, tag = 'smem constant byte address 0x4 - core index']
  #allocation1 [shape = 'u32[144,128]{1,0:T(1,128)}', space=vmem, size = 0x12000, scoped, tag = 'internal scratch']
  %s0 = inlined_call_operand.vmem [shape: s32[256,5], index: 0, kind: input, shape index: {}]
  %s1 = inlined_call_operand.vmem [shape: f32[64,128], index: 1, kind: input, shape index: {}]
  %s2 = inlined_call_operand.vmem [shape: f32[64,128], index: 2, kind: input, shape index: {}]
  %s3 = inlined_call_operand.hbm [shape: f32[2,8,128], index: 3, kind: output, shape index: {}]
  %s4 = sld [smem:[#allocation0]]
  $region45: #{tpu_custom_call.1} parent=0
    _
  %s6 = ssub.s32 1, %s4
  %s7 = scalar_select 0, %s6, %s4
  $region1: #{tpu_custom_call.1} parent=0
    #allocation2 [shape = 'u8[8192]{0}', space=vmem, size = 0x2000, scoped, tag = 'output window, operand 0']
    #allocation3 [shape = 's32[2]{0}', space=sflag, size = 0x8, scoped, tag = 'scoped memory for tpu_custom_call.1']
    %8 = vsyncpa [#allocation3], 0
    %s9 = scalar_lea.sflag [#allocation3], 1
    %10 = vsyncpa %s9, 0
    loop: start=0, step=1, limit=4
    $region2: #{tpu_custom_call.1} parent=1 // loop_pre_header
      _
    $region3: #{tpu_custom_call.1} parent=1 // loop_header
      %s12 = sphi 0, %s16
      %p13 = scmp.ge.s32.totalorder %s12, 4
      %s22 = sphi 0, %s24
      %s25 = sphi 0, %s22
      %s26 = sphi 0, %s25
      %s42 = sphi 0, %s26
      %s46 = sphi 0, %s46
      %s48 = sphi 0, %s46
      %s49 = sphi 0, %s48
      %s63 = sphi 0, %s49
      %s67 = sphi 0, %s67
      %s69 = sphi 0, %s67
      %s70 = sphi 0, %s69
      %s84 = sphi 0, %s70
      %s90 = sphi 0, %s92
      %s93 = sphi 0, %s90
      %s94 = sphi 0, %s93
      %s110 = sphi 0, %s94
    $region4: #{tpu_custom_call.1} parent=1 // loop_header_branch
      %15 = sbr.rel (%p13) target = $region8
    $region5: #{tpu_custom_call.1} parent=1 // loop_body
      %s17 = ssub.s32 %s12, 1
      %s18 = ssub.s32 %s12, 2
      %s19 = sadd.s32 %s12, 1
      %s20 = ssub.s32 %s12, %s19
      %p21 = scmp.eq.s32.totalorder %s20, 0
      %s23 = sadd.s32 %s22, 1
      %s24 = scalar_select %p21, %s22, %s23
      %p27 = pneg %p21
      %p28 = scmp.eq.s32.totalorder %s12, 1
      %p29 = por %p27, %p28
      %p30 = scmp.ne.s32.totalorder %s22, %s25
      %p31 = scmp.eq.s32.totalorder %s12, 0
      %p32 = por %p30, %p31
      %p33 = scmp.ne.s32.totalorder %s22, %s25
      %p34 = scmp.eq.s32.totalorder %s17, 1
      %p35 = por %p33, %p34
      %p36 = scmp.ne.s32.totalorder %s25, %s26
      %p37 = scmp.eq.s32.totalorder %s17, 0
      %p38 = por %p36, %p37
      %p39 = scmp.ne.s32.totalorder %s25, %s26
      %p40 = scmp.eq.s32.totalorder %s18, 1
      %p41 = por %p39, %p40
      %p43 = scmp.ne.s32.totalorder %s26, %s42
      %p44 = scmp.eq.s32.totalorder %s18, 0
      %p45 = por %p43, %p44
      %s47 = sadd.s32 %s46, 1
      %p50 = scmp.eq.s32.totalorder %s12, 1
      %p51 = scmp.ne.s32.totalorder %s46, %s48
      %p52 = scmp.eq.s32.totalorder %s12, 0
      %p53 = por %p51, %p52
      %p54 = scmp.ne.s32.totalorder %s46, %s48
      %p55 = scmp.eq.s32.totalorder %s17, 1
      %p56 = por %p54, %p55
      %p57 = scmp.ne.s32.totalorder %s48, %s49
      %p58 = scmp.eq.s32.totalorder %s17, 0
      %p59 = por %p57, %p58
      %p60 = scmp.ne.s32.totalorder %s48, %s49
      %p61 = scmp.eq.s32.totalorder %s18, 1
      %p62 = por %p60, %p61
      %p64 = scmp.ne.s32.totalorder %s49, %s63
      %p65 = scmp.eq.s32.totalorder %s18, 0
      %p66 = por %p64, %p65
      %s68 = sadd.s32 %s67, 1
      %p71 = scmp.eq.s32.totalorder %s12, 1
      %p72 = scmp.ne.s32.totalorder %s67, %s69
      %p73 = scmp.eq.s32.totalorder %s12, 0
      %p74 = por %p72, %p73
      %p75 = scmp.ne.s32.totalorder %s67, %s69
      %p76 = scmp.eq.s32.totalorder %s17, 1
      %p77 = por %p75, %p76
      %p78 = scmp.ne.s32.totalorder %s69, %s70
      %p79 = scmp.eq.s32.totalorder %s17, 0
      %p80 = por %p78, %p79
      %p81 = scmp.ne.s32.totalorder %s69, %s70
      %p82 = scmp.eq.s32.totalorder %s18, 1
      %p83 = por %p81, %p82
      %p85 = scmp.ne.s32.totalorder %s70, %s84
      %p86 = scmp.eq.s32.totalorder %s18, 0
      %p87 = por %p85, %p86
      %s88 = ssub.s32 %s12, %s19
      %p89 = scmp.eq.s32.totalorder %s88, 0
      %s91 = sadd.s32 %s90, 1
      %s92 = scalar_select %p89, %s90, %s91
      %p95 = pneg %p89
      %p96 = scmp.eq.s32.totalorder %s12, 1
      %p97 = por %p95, %p96
      %p98 = scmp.ne.s32.totalorder %s90, %s93
      %p99 = scmp.eq.s32.totalorder %s12, 0
      %p100 = por %p98, %p99
      %p101 = scmp.ne.s32.totalorder %s90, %s93
      %p102 = scmp.eq.s32.totalorder %s17, 1
      %p103 = por %p101, %p102
      %p104 = scmp.ne.s32.totalorder %s93, %s94
      %p105 = scmp.eq.s32.totalorder %s17, 0
      %p106 = por %p104, %p105
      %p107 = scmp.ne.s32.totalorder %s93, %s94
      %p108 = scmp.eq.s32.totalorder %s18, 1
      %p109 = por %p107, %p108
      %p111 = scmp.ne.s32.totalorder %s94, %s110
      %p112 = scmp.eq.s32.totalorder %s18, 0
      %p113 = por %p111, %p112
      %p114 = scmp.le.s32.totalorder 1, %s12
      %p115 = scmp.lt.s32.totalorder %s12, 3
      %p116 = pnand %p114, %p115
      %p117 = pneg %p116
      // Predicated region
      $region9: #{tpu_custom_call.1} parent=5 // pred_check
        _
      $region10: #{tpu_custom_call.1} parent=5 // pred_check_branch
        %119 = sbr.rel (%p116) target = $region12
      $region11: #{tpu_custom_call.1} parent=5 // pred_region
        %s120 = ssub.s32 %s12, 1
        // Predicated region
        $region13: #{tpu_custom_call.1} parent=11 // pred_check
          %p121 = pneg %p59
        $region14: #{tpu_custom_call.1} parent=11 // pred_check_branch
          %123 = sbr.rel (%p121) target = $region16
        $region15: #{tpu_custom_call.1} parent=11 // pred_region
          _
        $region16: #{tpu_custom_call.1} parent=11 // pred_fallthru
          _
        // Predicated region
        $region17: #{tpu_custom_call.1} parent=11 // pred_check
          %p124 = pneg %p80
        $region18: #{tpu_custom_call.1} parent=11 // pred_check_branch
          %126 = sbr.rel (%p124) target = $region20
        $region19: #{tpu_custom_call.1} parent=11 // pred_region
          _
        $region20: #{tpu_custom_call.1} parent=11 // pred_fallthru
          _
      $region12: #{tpu_custom_call.1} parent=5 // pred_fallthru
        _
      %p127 = scmp.lt.s32.totalorder %s12, 2
      // Predicated region
      $region21: #{tpu_custom_call.1} parent=5 // pred_check
        %p128 = pneg %p127
      $region22: #{tpu_custom_call.1} parent=5 // pred_check_branch
        %130 = sbr.rel (%p128) target = $region24
      $region23: #{tpu_custom_call.1} parent=5 // pred_region
        // Predicated region
        $region25: #{tpu_custom_call.1} parent=23 // pred_check
          %p131 = pneg %p32
        $region26: #{tpu_custom_call.1} parent=23 // pred_check_branch
          %133 = sbr.rel (%p131) target = $region28
        $region27: #{tpu_custom_call.1} parent=23 // pred_region
          %s134 = smul.u32 16, %s12
          %p135 = scmp.lt.s32.totalorder %s134, 31
          %s136 = scalar_select %p135, %s134, 31
          %s137 = smul.addr %s136, 8
          %s138 = scalar_lea.vmem %s0, %s137
          %s139 = smul.u32 16, %s12
        $region28: #{tpu_custom_call.1} parent=23 // pred_fallthru
          _
      $region24: #{tpu_custom_call.1} parent=5 // pred_fallthru
        _
      %p140 = scmp.le.s32.totalorder 1, %s12
      %p141 = scmp.lt.s32.totalorder %s12, 3
      %p142 = pnand %p140, %p141
      %p143 = pneg %p142
      // Predicated region
      $region29: #{tpu_custom_call.1} parent=5 // pred_check
        _
      $region30: #{tpu_custom_call.1} parent=5 // pred_check_branch
        %145 = sbr.rel (%p142) target = $region32
      $region31: #{tpu_custom_call.1} parent=5 // pred_region
        %s146 = ssub.s32 %s12, 1
        %s147 = smul.u32 16, %s17
        %p148 = scmp.lt.s32.totalorder %s147, 31
        %s149 = scalar_select %p148, %s147, 31
        %s150 = smul.addr %s149, 8
        %s151 = scalar_lea.vmem %s0, %s150
        %p152 = pneg %p38
        %p153 = pneg %p35
        %p154 = pneg %p59
        %p155 = pneg %p56
        %p156 = pneg %p80
        %p157 = pneg %p77
        %p158 = pneg %p106
        %p159 = pneg %p103
        %s160 = sand.u32 %s93, 1
        %s161 = scalar_lea.sflag [#allocation3], %s160
        %s162 = sand.u32 %s93, 1
        %s163 = smul.addr %s162, 8
        %s164 = scalar_lea.vmem [#allocation2], %s163
        %s165 = smul.u32 16, %s17
        %p166 = scmp.lt.s32.totalorder %s165, 31
        %s167 = scalar_select %p166, %s165, 31
        %s168 = smul.addr %s167, 8
        %s169 = scalar_lea.vmem %s0, %s168
        %s170 = smul.u32 16, %s17
        %v171 = vld [vmem:[%s169] sm:$0xff]
        %v172 = vld [vmem:[%s169 + $0x8] sm:$0xff]
        %v173 = vld [vmem:[%s169 + $0x10] sm:$0xff]
        %v174 = vld [vmem:[%s169 + $0x18] sm:$0xff]
        %v175 = vld [vmem:[%s169 + $0x20] sm:$0xff]
        %v176 = vld [vmem:[%s169 + $0x28] sm:$0xff]
        %v177 = vld [vmem:[%s169 + $0x30] sm:$0xff]
        %v178 = vld [vmem:[%s169 + $0x38] sm:$0xff]
        %v179 = vld [vmem:[%s169 + $0x40] sm:$0xff]
        %v180 = vld [vmem:[%s169 + $0x48] sm:$0xff]
        %v181 = vld [vmem:[%s169 + $0x50] sm:$0xff]
        %v182 = vld [vmem:[%s169 + $0x58] sm:$0xff]
        %v183 = vld [vmem:[%s169 + $0x60] sm:$0xff]
        %v184 = vld [vmem:[%s169 + $0x68] sm:$0xff]
        %v185 = vld [vmem:[%s169 + $0x70] sm:$0xff]
        %v186 = vld [vmem:[%s169 + $0x78] sm:$0xff]
        %v187 = vlaneseq
        %v188 = vand.u32 %v187, 127
        %189 = vset.pattern.permute.xlu0 0
        %190 = vperm.xlu0 %189, %v171
        %v191 = vpop.permute.xlu0 %190
        %192 = vset.pattern.permute.xlu0 0
        %193 = vperm.xlu0 %192, %v172
        %v194 = vpop.permute.xlu0 %193
        %195 = vset.pattern.permute.xlu0 0
        %196 = vperm.xlu0 %195, %v173
        %v197 = vpop.permute.xlu0 %196
        %198 = vset.pattern.permute.xlu0 0
        %199 = vperm.xlu0 %198, %v174
        %v200 = vpop.permute.xlu0 %199
        %201 = vset.pattern.permute.xlu0 0
        %202 = vperm.xlu0 %201, %v175
        %v203 = vpop.permute.xlu0 %202
        %204 = vset.pattern.permute.xlu0 0
        %205 = vperm.xlu0 %204, %v176
        %v206 = vpop.permute.xlu0 %205
        %207 = vset.pattern.permute.xlu0 0
        %208 = vperm.xlu0 %207, %v177
        %v209 = vpop.permute.xlu0 %208
        %210 = vset.pattern.permute.xlu0 0
        %211 = vperm.xlu0 %210, %v178
        %v212 = vpop.permute.xlu0 %211
        %213 = vset.pattern.permute.xlu0 0
        %214 = vperm.xlu0 %213, %v179
        %v215 = vpop.permute.xlu0 %214
        %216 = vset.pattern.permute.xlu0 0
        %217 = vperm.xlu0 %216, %v180
        %v218 = vpop.permute.xlu0 %217
        %219 = vset.pattern.permute.xlu0 0
        %220 = vperm.xlu0 %219, %v181
        %v221 = vpop.permute.xlu0 %220
        %222 = vset.pattern.permute.xlu0 0
        %223 = vperm.xlu0 %222, %v182
        %v224 = vpop.permute.xlu0 %223
        %225 = vset.pattern.permute.xlu0 0
        %226 = vperm.xlu0 %225, %v183
        %v227 = vpop.permute.xlu0 %226
        %228 = vset.pattern.permute.xlu0 0
        %229 = vperm.xlu0 %228, %v184
        %v230 = vpop.permute.xlu0 %229
        %231 = vset.pattern.permute.xlu0 0
        %232 = vperm.xlu0 %231, %v185
        %v233 = vpop.permute.xlu0 %232
        %234 = vset.pattern.permute.xlu0 0
        %235 = vperm.xlu0 %234, %v186
        %v236 = vpop.permute.xlu0 %235
        %vm237 = vcmp.eq.s32.totalorder %v191, %v188
        %vm238 = vcmp.eq.s32.totalorder %v194, %v188
        %vm239 = vcmp.eq.s32.totalorder %v197, %v188
        %vm240 = vcmp.eq.s32.totalorder %v200, %v188
        %vm241 = vcmp.eq.s32.totalorder %v203, %v188
        %vm242 = vcmp.eq.s32.totalorder %v206, %v188
        %vm243 = vcmp.eq.s32.totalorder %v209, %v188
        %vm244 = vcmp.eq.s32.totalorder %v212, %v188
        %vm245 = vcmp.eq.s32.totalorder %v215, %v188
        %vm246 = vcmp.eq.s32.totalorder %v218, %v188
        %vm247 = vcmp.eq.s32.totalorder %v221, %v188
        %vm248 = vcmp.eq.s32.totalorder %v224, %v188
        %vm249 = vcmp.eq.s32.totalorder %v227, %v188
        %vm250 = vcmp.eq.s32.totalorder %v230, %v188
        %vm251 = vcmp.eq.s32.totalorder %v233, %v188
        %vm252 = vcmp.eq.s32.totalorder %v236, %v188
        %v253 = vsel %vm237, 1, 0
        %v254 = vsel %vm238, 1, 0
        %v255 = vsel %vm239, 1, 0
        %v256 = vsel %vm240, 1, 0
        %v257 = vsel %vm241, 1, 0
        %v258 = vsel %vm242, 1, 0
        %v259 = vsel %vm243, 1, 0
        %v260 = vsel %vm244, 1, 0
        %v261 = vsel %vm245, 1, 0
        %v262 = vsel %vm246, 1, 0
        %v263 = vsel %vm247, 1, 0
        %v264 = vsel %vm248, 1, 0
        %v265 = vsel %vm249, 1, 0
        %v266 = vsel %vm250, 1, 0
        %v267 = vsel %vm251, 1, 0
        %v268 = vsel %vm252, 1, 0
        %v269 = vcvt.s32.f32 %v253
        %v270 = vcvt.s32.f32 %v254
        %v271 = vcvt.s32.f32 %v255
        %v272 = vcvt.s32.f32 %v256
        %v273 = vcvt.s32.f32 %v257
        %v274 = vcvt.s32.f32 %v258
        %v275 = vcvt.s32.f32 %v259
        %v276 = vcvt.s32.f32 %v260
        %v277 = vcvt.s32.f32 %v261
        %v278 = vcvt.s32.f32 %v262
        %v279 = vcvt.s32.f32 %v263
        %v280 = vcvt.s32.f32 %v264
        %v281 = vcvt.s32.f32 %v265
        %v282 = vcvt.s32.f32 %v266
        %v283 = vcvt.s32.f32 %v267
        %v284 = vcvt.s32.f32 %v268
        %v285 = vld [vmem:[%s1] sm:$0xff]
        %v286 = vld [vmem:[%s1 + $0x8] sm:$0xff]
        %v287 = vld [vmem:[%s1 + $0x10] sm:$0xff]
        %v288 = vld [vmem:[%s1 + $0x18] sm:$0xff]
        %v289 = vld [vmem:[%s1 + $0x20] sm:$0xff]
        %v290 = vld [vmem:[%s1 + $0x28] sm:$0xff]
        %v291 = vld [vmem:[%s1 + $0x30] sm:$0xff]
        %v292 = vld [vmem:[%s1 + $0x38] sm:$0xff]
        %vm293 = vcmask 523264
        %v295 = vsel %vm293, %v269, 0
        %v298 = vsel %vm293, %v270, 0
        %v301 = vsel %vm293, %v271, 0
        %v304 = vsel %vm293, %v272, 0
        %v307 = vsel %vm293, %v273, 0
        %v310 = vsel %vm293, %v274, 0
        %v313 = vsel %vm293, %v275, 0
        %v316 = vsel %vm293, %v276, 0
        %v319 = vsel %vm293, %v277, 0
        %v322 = vsel %vm293, %v278, 0
        %v325 = vsel %vm293, %v279, 0
        %v328 = vsel %vm293, %v280, 0
        %v331 = vsel %vm293, %v281, 0
        %v334 = vsel %vm293, %v282, 0
        %v337 = vsel %vm293, %v283, 0
        %v340 = vsel %vm293, %v284, 0
        %342 = vmatprep.subr.mxu0 0.0
        %343 = vmatpush1.msra.mxu0 %v285
        %344 = vmatprep.subr.mxu0 0.0
        %345 = vmatpush1.msra.mxu0 %v286
        %346 = vmatprep.subr.mxu0 0.0
        %347 = vmatpush1.msra.mxu0 %v287
        %348 = vmatprep.subr.mxu0 0.0
        %349 = vmatpush1.msra.mxu0 %v288
        %350 = vmatprep.subr.mxu0 0.0
        %351 = vmatpush1.msra.mxu0 %v289
        %352 = vmatprep.subr.mxu0 0.0
        %353 = vmatpush1.msra.mxu0 %v290
        %354 = vmatprep.subr.mxu0 0.0
        %355 = vmatpush1.msra.mxu0 %v291
        %356 = vmatprep.subr.mxu0 0.0
        %357 = vmatpush1.msra.mxu0 %v292
        %358 = vmatprep.subr.mxu0 0.0
        %359 = vmatpush1.msra.mxu0 0.0
        %360 = vmatprep.subr.mxu0 0.0
        %361 = vmatpush1.msra.mxu0 0.0
        %362 = vmatprep.subr.mxu0 0.0
        %363 = vmatpush1.msra.mxu0 0.0
        %364 = vmatprep.subr.mxu0 0.0
        %365 = vmatpush1.msra.mxu0 0.0
        %366 = vmatprep.subr.mxu0 0.0
        %367 = vmatpush1.msra.mxu0 0.0
        %368 = vmatprep.subr.mxu0 0.0
        %369 = vmatpush1.msra.mxu0 0.0
        %370 = vmatprep.subr.mxu0 0.0
        %371 = vmatpush1.msra.mxu0 0.0
        %372 = vmatprep.subr.mxu0 0.0
        %373 = vmatpush1.msra.mxu0 0.0
        %374 = vmatprep.subr.mxu0 0.0
        %375 = vmatpush1.msra.mxu0 0.0
        %376 = vmatprep.subr.mxu0 0.0
        %377 = vmatpush1.msra.mxu0 0.0
        %378 = vmatprep.subr.mxu0 0.0
        %379 = vmatpush1.msra.mxu0 0.0
        %380 = vmatprep.subr.mxu0 0.0
        %381 = vmatpush1.msra.mxu0 0.0
        %382 = vmatprep.subr.mxu0 0.0
        %383 = vmatpush1.msra.mxu0 0.0
        %384 = vmatprep.subr.mxu0 0.0
        %385 = vmatpush1.msra.mxu0 0.0
        %386 = vmatprep.subr.mxu0 0.0
        %387 = vmatpush1.msra.mxu0 0.0
        %388 = vmatprep.subr.mxu0 0.0
        %389 = vmatpush1.msra.mxu0 0.0
        %390 = vmatprep.subr.mxu0 0.0
        %391 = vmatpush1.msra.mxu0 0.0
        %392 = vmatprep.subr.mxu0 0.0
        %393 = vmatpush1.msra.mxu0 0.0
        %394 = vmatprep.subr.mxu0 0.0
        %395 = vmatpush1.msra.mxu0 0.0
        %396 = vmatprep.subr.mxu0 0.0
        %397 = vmatpush1.msra.mxu0 0.0
        %398 = vmatprep.subr.mxu0 0.0
        %399 = vmatpush1.msra.mxu0 0.0
        %400 = vmatprep.subr.mxu0 0.0
        %401 = vmatpush1.msra.mxu0 0.0
        %402 = vmatprep.subr.mxu0 0.0
        %403 = vmatpush1.msra.mxu0 0.0
        %404 = vmatprep.subr.mxu0 0.0
        %405 = vmatpush1.msra.mxu0 0.0
        %406 = vmatprep.mubr.f32.mxu0 0.0
        %407 = vmatmul.mubr.f32.gmra.mrb[0].mxu0 %v295
        %v408 = vpop.f32.mrb[0].mxu0
        %v409 = vadd.f32 0.0, %v408
        %v410 = vpop.f32.mrb[0].mxu0
        %411 = vmatprep.mubr.f32.mxu0 0.0
        %412 = vmatmul.mubr.f32.gmra.mrb[0].mxu0 %v298
        %v413 = vpop.f32.mrb[0].mxu0
        %v414 = vadd.f32 0.0, %v413
        %v415 = vpop.f32.mrb[0].mxu0
        %416 = vmatprep.mubr.f32.mxu0 0.0
        %417 = vmatmul.mubr.f32.gmra.mrb[0].mxu0 %v301
        %v418 = vpop.f32.mrb[0].mxu0
        %v419 = vadd.f32 0.0, %v418
        %v420 = vpop.f32.mrb[0].mxu0
        %421 = vmatprep.mubr.f32.mxu0 0.0
        %422 = vmatmul.mubr.f32.gmra.mrb[0].mxu0 %v304
        %v423 = vpop.f32.mrb[0].mxu0
        %v424 = vadd.f32 0.0, %v423
        %v425 = vpop.f32.mrb[0].mxu0
        %426 = vmatprep.mubr.f32.mxu0 0.0
        %427 = vmatmul.mubr.f32.gmra.mrb[0].mxu0 %v307
        %v428 = vpop.f32.mrb[0].mxu0
        %v429 = vadd.f32 0.0, %v428
        %v430 = vpop.f32.mrb[0].mxu0
        %431 = vmatprep.mubr.f32.mxu0 0.0
        %432 = vmatmul.mubr.f32.gmra.mrb[0].mxu0 %v310
        %v433 = vpop.f32.mrb[0].mxu0
        %v434 = vadd.f32 0.0, %v433
        %v435 = vpop.f32.mrb[0].mxu0
        %436 = vmatprep.mubr.f32.mxu0 0.0
        %437 = vmatmul.mubr.f32.gmra.mrb[0].mxu0 %v313
        %v438 = vpop.f32.mrb[0].mxu0
        %v439 = vadd.f32 0.0, %v438
        %v440 = vpop.f32.mrb[0].mxu0
        %441 = vmatprep.mubr.f32.mxu0 0.0
        %442 = vmatmul.mubr.f32.gmra.mrb[0].mxu0 %v316
        %v443 = vpop.f32.mrb[0].mxu0
        %v444 = vadd.f32 0.0, %v443
        %v445 = vpop.f32.mrb[0].mxu0
        %446 = vmatprep.mubr.f32.mxu0 0.0
        %447 = vmatmul.mubr.f32.gmra.mrb[0].mxu0 %v319
        %v448 = vpop.f32.mrb[0].mxu0
        %v449 = vadd.f32 0.0, %v448
        %v450 = vpop.f32.mrb[0].mxu0
        %451 = vmatprep.mubr.f32.mxu0 0.0
        %452 = vmatmul.mubr.f32.gmra.mrb[0].mxu0 %v322
        %v453 = vpop.f32.mrb[0].mxu0
        %v454 = vadd.f32 0.0, %v453
        %v455 = vpop.f32.mrb[0].mxu0
        %456 = vmatprep.mubr.f32.mxu0 0.0
        %457 = vmatmul.mubr.f32.gmra.mrb[0].mxu0 %v325
        %v458 = vpop.f32.mrb[0].mxu0
        %v459 = vadd.f32 0.0, %v458
        %v460 = vpop.f32.mrb[0].mxu0
        %461 = vmatprep.mubr.f32.mxu0 0.0
        %462 = vmatmul.mubr.f32.gmra.mrb[0].mxu0 %v328
        %v463 = vpop.f32.mrb[0].mxu0
        %v464 = vadd.f32 0.0, %v463
        %v465 = vpop.f32.mrb[0].mxu0
        %466 = vmatprep.mubr.f32.mxu0 0.0
        %467 = vmatmul.mubr.f32.gmra.mrb[0].mxu0 %v331
        %v468 = vpop.f32.mrb[0].mxu0
        %v469 = vadd.f32 0.0, %v468
        %v470 = vpop.f32.mrb[0].mxu0
        %471 = vmatprep.mubr.f32.mxu0 0.0
        %472 = vmatmul.mubr.f32.gmra.mrb[0].mxu0 %v334
        %v473 = vpop.f32.mrb[0].mxu0
        %v474 = vadd.f32 0.0, %v473
        %v475 = vpop.f32.mrb[0].mxu0
        %476 = vmatprep.mubr.f32.mxu0 0.0
        %477 = vmatmul.mubr.f32.gmra.mrb[0].mxu0 %v337
        %v478 = vpop.f32.mrb[0].mxu0
        %v479 = vadd.f32 0.0, %v478
        %v480 = vpop.f32.mrb[0].mxu0
        %481 = vmatprep.mubr.f32.mxu0 0.0
        %482 = vmatmul.mubr.f32.gmra.mrb[0].mxu0 %v340
        %v483 = vpop.f32.mrb[0].mxu0
        %v484 = vadd.f32 0.0, %v483
        %v485 = vpop.f32.mrb[0].mxu0
        %486 = vdwg.mxu0
        %v487 = vld [vmem:[%s2] sm:$0xff]
        %v488 = vld [vmem:[%s2 + $0x8] sm:$0xff]
        %v489 = vld [vmem:[%s2 + $0x10] sm:$0xff]
        %v490 = vld [vmem:[%s2 + $0x18] sm:$0xff]
        %v491 = vld [vmem:[%s2 + $0x20] sm:$0xff]
        %v492 = vld [vmem:[%s2 + $0x28] sm:$0xff]
        %v493 = vld [vmem:[%s2 + $0x30] sm:$0xff]
        %v494 = vld [vmem:[%s2 + $0x38] sm:$0xff]
        %495 = vset.pattern.permute.xlu0 1
        %496 = vperm.xlu0 %495, %v171
        %v497 = vpop.permute.xlu0 %496
        %498 = vset.pattern.permute.xlu0 1
        %499 = vperm.xlu0 %498, %v172
        %v500 = vpop.permute.xlu0 %499
        %501 = vset.pattern.permute.xlu0 1
        %502 = vperm.xlu0 %501, %v173
        %v503 = vpop.permute.xlu0 %502
        %504 = vset.pattern.permute.xlu0 1
        %505 = vperm.xlu0 %504, %v174
        %v506 = vpop.permute.xlu0 %505
        %507 = vset.pattern.permute.xlu0 1
        %508 = vperm.xlu0 %507, %v175
        %v509 = vpop.permute.xlu0 %508
        %510 = vset.pattern.permute.xlu0 1
        %511 = vperm.xlu0 %510, %v176
        %v512 = vpop.permute.xlu0 %511
        %513 = vset.pattern.permute.xlu0 1
        %514 = vperm.xlu0 %513, %v177
        %v515 = vpop.permute.xlu0 %514
        %516 = vset.pattern.permute.xlu0 1
        %517 = vperm.xlu0 %516, %v178
        %v518 = vpop.permute.xlu0 %517
        %519 = vset.pattern.permute.xlu0 1
        %520 = vperm.xlu0 %519, %v179
        %v521 = vpop.permute.xlu0 %520
        %522 = vset.pattern.permute.xlu0 1
        %523 = vperm.xlu0 %522, %v180
        %v524 = vpop.permute.xlu0 %523
        %525 = vset.pattern.permute.xlu0 1
        %526 = vperm.xlu0 %525, %v181
        %v527 = vpop.permute.xlu0 %526
        %528 = vset.pattern.permute.xlu0 1
        %529 = vperm.xlu0 %528, %v182
        %v530 = vpop.permute.xlu0 %529
        %531 = vset.pattern.permute.xlu0 1
        %532 = vperm.xlu0 %531, %v183
        %v533 = vpop.permute.xlu0 %532
        %534 = vset.pattern.permute.xlu0 1
        %535 = vperm.xlu0 %534, %v184
        %v536 = vpop.permute.xlu0 %535
        %537 = vset.pattern.permute.xlu0 1
        %538 = vperm.xlu0 %537, %v185
        %v539 = vpop.permute.xlu0 %538
        %540 = vset.pattern.permute.xlu0 1
        %541 = vperm.xlu0 %540, %v186
        %v542 = vpop.permute.xlu0 %541
        %vm543 = vcmp.eq.s32.totalorder %v497, %v188
        %vm544 = vcmp.eq.s32.totalorder %v500, %v188
        %vm545 = vcmp.eq.s32.totalorder %v503, %v188
        %vm546 = vcmp.eq.s32.totalorder %v506, %v188
        %vm547 = vcmp.eq.s32.totalorder %v509, %v188
        %vm548 = vcmp.eq.s32.totalorder %v512, %v188
        %vm549 = vcmp.eq.s32.totalorder %v515, %v188
        %vm550 = vcmp.eq.s32.totalorder %v518, %v188
        %vm551 = vcmp.eq.s32.totalorder %v521, %v188
        %vm552 = vcmp.eq.s32.totalorder %v524, %v188
        %vm553 = vcmp.eq.s32.totalorder %v527, %v188
        %vm554 = vcmp.eq.s32.totalorder %v530, %v188
        %vm555 = vcmp.eq.s32.totalorder %v533, %v188
        %vm556 = vcmp.eq.s32.totalorder %v536, %v188
        %vm557 = vcmp.eq.s32.totalorder %v539, %v188
        %vm558 = vcmp.eq.s32.totalorder %v542, %v188
        %v559 = vsel %vm543, 1, 0
        %v560 = vsel %vm544, 1, 0
        %v561 = vsel %vm545, 1, 0
        %v562 = vsel %vm546, 1, 0
        %v563 = vsel %vm547, 1, 0
        %v564 = vsel %vm548, 1, 0
        %v565 = vsel %vm549, 1, 0
        %v566 = vsel %vm550, 1, 0
        %v567 = vsel %vm551, 1, 0
        %v568 = vsel %vm552, 1, 0
        %v569 = vsel %vm553, 1, 0
        %v570 = vsel %vm554, 1, 0
        %v571 = vsel %vm555, 1, 0
        %v572 = vsel %vm556, 1, 0
        %v573 = vsel %vm557, 1, 0
        %v574 = vsel %vm558, 1, 0
        %v575 = vcvt.s32.f32 %v559
        %v576 = vcvt.s32.f32 %v560
        %v577 = vcvt.s32.f32 %v561
        %v578 = vcvt.s32.f32 %v562
        %v579 = vcvt.s32.f32 %v563
        %v580 = vcvt.s32.f32 %v564
        %v581 = vcvt.s32.f32 %v565
        %v582 = vcvt.s32.f32 %v566
        %v583 = vcvt.s32.f32 %v567
        %v584 = vcvt.s32.f32 %v568
        %v585 = vcvt.s32.f32 %v569
        %v586 = vcvt.s32.f32 %v570
        %v587 = vcvt.s32.f32 %v571
        %v588 = vcvt.s32.f32 %v572
        %v589 = vcvt.s32.f32 %v573
        %v590 = vcvt.s32.f32 %v574
        %v592 = vsel %vm293, %v575, 0
        %v595 = vsel %vm293, %v576, 0
        %v598 = vsel %vm293, %v577, 0
        %v601 = vsel %vm293, %v578, 0
        %v604 = vsel %vm293, %v579, 0
        %v607 = vsel %vm293, %v580, 0
        %v610 = vsel %vm293, %v581, 0
        %v613 = vsel %vm293, %v582, 0
        %v616 = vsel %vm293, %v583, 0
        %v619 = vsel %vm293, %v584, 0
        %v622 = vsel %vm293, %v585, 0
        %v625 = vsel %vm293, %v586, 0
        %v628 = vsel %vm293, %v587, 0
        %v631 = vsel %vm293, %v588, 0
        %v634 = vsel %vm293, %v589, 0
        %v637 = vsel %vm293, %v590, 0
        %639 = vmatprep.subr.mxu0 0.0
        %640 = vmatpush1.msra.mxu0 %v487
        %641 = vmatprep.subr.mxu0 0.0
        %642 = vmatpush1.msra.mxu0 %v488
        %643 = vmatprep.subr.mxu0 0.0
        %644 = vmatpush1.msra.mxu0 %v489
        %645 = vmatprep.subr.mxu0 0.0
        %646 = vmatpush1.msra.mxu0 %v490
        %647 = vmatprep.subr.mxu0 0.0
        %648 = vmatpush1.msra.mxu0 %v491
        %649 = vmatprep.subr.mxu0 0.0
        %650 = vmatpush1.msra.mxu0 %v492
        %651 = vmatprep.subr.mxu0 0.0
        %652 = vmatpush1.msra.mxu0 %v493
        %653 = vmatprep.subr.mxu0 0.0
        %654 = vmatpush1.msra.mxu0 %v494
        %655 = vmatprep.subr.mxu0 0.0
        %656 = vmatpush1.msra.mxu0 0.0
        %657 = vmatprep.subr.mxu0 0.0
        %658 = vmatpush1.msra.mxu0 0.0
        %659 = vmatprep.subr.mxu0 0.0
        %660 = vmatpush1.msra.mxu0 0.0
        %661 = vmatprep.subr.mxu0 0.0
        %662 = vmatpush1.msra.mxu0 0.0
        %663 = vmatprep.subr.mxu0 0.0
        %664 = vmatpush1.msra.mxu0 0.0
        %665 = vmatprep.subr.mxu0 0.0
        %666 = vmatpush1.msra.mxu0 0.0
        %667 = vmatprep.subr.mxu0 0.0
        %668 = vmatpush1.msra.mxu0 0.0
        %669 = vmatprep.subr.mxu0 0.0
        %670 = vmatpush1.msra.mxu0 0.0
        %671 = vmatprep.subr.mxu0 0.0
        %672 = vmatpush1.msra.mxu0 0.0
        %673 = vmatprep.subr.mxu0 0.0
        %674 = vmatpush1.msra.mxu0 0.0
        %675 = vmatprep.subr.mxu0 0.0
        %676 = vmatpush1.msra.mxu0 0.0
        %677 = vmatprep.subr.mxu0 0.0
        %678 = vmatpush1.msra.mxu0 0.0
        %679 = vmatprep.subr.mxu0 0.0
        %680 = vmatpush1.msra.mxu0 0.0
        %681 = vmatprep.subr.mxu0 0.0
        %682 = vmatpush1.msra.mxu0 0.0
        %683 = vmatprep.subr.mxu0 0.0
        %684 = vmatpush1.msra.mxu0 0.0
        %685 = vmatprep.subr.mxu0 0.0
        %686 = vmatpush1.msra.mxu0 0.0
        %687 = vmatprep.subr.mxu0 0.0
        %688 = vmatpush1.msra.mxu0 0.0
        %689 = vmatprep.subr.mxu0 0.0
        %690 = vmatpush1.msra.mxu0 0.0
        %691 = vmatprep.subr.mxu0 0.0
        %692 = vmatpush1.msra.mxu0 0.0
        %693 = vmatprep.subr.mxu0 0.0
        %694 = vmatpush1.msra.mxu0 0.0
        %695 = vmatprep.subr.mxu0 0.0
        %696 = vmatpush1.msra.mxu0 0.0
        %697 = vmatprep.subr.mxu0 0.0
        %698 = vmatpush1.msra.mxu0 0.0
        %699 = vmatprep.subr.mxu0 0.0
        %700 = vmatpush1.msra.mxu0 0.0
        %701 = vmatprep.subr.mxu0 0.0
        %702 = vmatpush1.msra.mxu0 0.0
        %703 = vmatprep.mubr.f32.mxu0 0.0
        %704 = vmatmul.mubr.f32.gmra.mrb[0].mxu0 %v592
        %v705 = vpop.f32.mrb[0].mxu0
        %v706 = vadd.f32 0.0, %v705
        %v707 = vpop.f32.mrb[0].mxu0
        %708 = vmatprep.mubr.f32.mxu0 0.0
        %709 = vmatmul.mubr.f32.gmra.mrb[0].mxu0 %v595
        %v710 = vpop.f32.mrb[0].mxu0
        %v711 = vadd.f32 0.0, %v710
        %v712 = vpop.f32.mrb[0].mxu0
        %713 = vmatprep.mubr.f32.mxu0 0.0
        %714 = vmatmul.mubr.f32.gmra.mrb[0].mxu0 %v598
        %v715 = vpop.f32.mrb[0].mxu0
        %v716 = vadd.f32 0.0, %v715
        %v717 = vpop.f32.mrb[0].mxu0
        %718 = vmatprep.mubr.f32.mxu0 0.0
        %719 = vmatmul.mubr.f32.gmra.mrb[0].mxu0 %v601
        %v720 = vpop.f32.mrb[0].mxu0
        %v721 = vadd.f32 0.0, %v720
        %v722 = vpop.f32.mrb[0].mxu0
        %723 = vmatprep.mubr.f32.mxu0 0.0
        %724 = vmatmul.mubr.f32.gmra.mrb[0].mxu0 %v604
        %v725 = vpop.f32.mrb[0].mxu0
        %v726 = vadd.f32 0.0, %v725
        %v727 = vpop.f32.mrb[0].mxu0
        %728 = vmatprep.mubr.f32.mxu0 0.0
        %729 = vmatmul.mubr.f32.gmra.mrb[0].mxu0 %v607
        %v730 = vpop.f32.mrb[0].mxu0
        %v731 = vadd.f32 0.0, %v730
        %v732 = vpop.f32.mrb[0].mxu0
        %733 = vmatprep.mubr.f32.mxu0 0.0
        %734 = vmatmul.mubr.f32.gmra.mrb[0].mxu0 %v610
        %v735 = vpop.f32.mrb[0].mxu0
        %v736 = vadd.f32 0.0, %v735
        %v737 = vpop.f32.mrb[0].mxu0
        %738 = vmatprep.mubr.f32.mxu0 0.0
        %739 = vmatmul.mubr.f32.gmra.mrb[0].mxu0 %v613
        %v740 = vpop.f32.mrb[0].mxu0
        %v741 = vadd.f32 0.0, %v740
        %v742 = vpop.f32.mrb[0].mxu0
        %743 = vmatprep.mubr.f32.mxu0 0.0
        %744 = vmatmul.mubr.f32.gmra.mrb[0].mxu0 %v616
        %v745 = vpop.f32.mrb[0].mxu0
        %v746 = vadd.f32 0.0, %v745
        %v747 = vpop.f32.mrb[0].mxu0
        %748 = vmatprep.mubr.f32.mxu0 0.0
        %749 = vmatmul.mubr.f32.gmra.mrb[0].mxu0 %v619
        %v750 = vpop.f32.mrb[0].mxu0
        %v751 = vadd.f32 0.0, %v750
        %v752 = vpop.f32.mrb[0].mxu0
        %753 = vmatprep.mubr.f32.mxu0 0.0
        %754 = vmatmul.mubr.f32.gmra.mrb[0].mxu0 %v622
        %v755 = vpop.f32.mrb[0].mxu0
        %v756 = vadd.f32 0.0, %v755
        %v757 = vpop.f32.mrb[0].mxu0
        %758 = vmatprep.mubr.f32.mxu0 0.0
        %759 = vmatmul.mubr.f32.gmra.mrb[0].mxu0 %v625
        %v760 = vpop.f32.mrb[0].mxu0
        %v761 = vadd.f32 0.0, %v760
        %v762 = vpop.f32.mrb[0].mxu0
        %763 = vmatprep.mubr.f32.mxu0 0.0
        %764 = vmatmul.mubr.f32.gmra.mrb[0].mxu0 %v628
        %v765 = vpop.f32.mrb[0].mxu0
        %v766 = vadd.f32 0.0, %v765
        %v767 = vpop.f32.mrb[0].mxu0
        %768 = vmatprep.mubr.f32.mxu0 0.0
        %769 = vmatmul.mubr.f32.gmra.mrb[0].mxu0 %v631
        %v770 = vpop.f32.mrb[0].mxu0
        %v771 = vadd.f32 0.0, %v770
        %v772 = vpop.f32.mrb[0].mxu0
        %773 = vmatprep.mubr.f32.mxu0 0.0
        %774 = vmatmul.mubr.f32.gmra.mrb[0].mxu0 %v634
        %v775 = vpop.f32.mrb[0].mxu0
        %v776 = vadd.f32 0.0, %v775
        %v777 = vpop.f32.mrb[0].mxu0
        %778 = vmatprep.mubr.f32.mxu0 0.0
        %779 = vmatmul.mubr.f32.gmra.mrb[0].mxu0 %v637
        %v780 = vpop.f32.mrb[0].mxu0
        %v781 = vadd.f32 0.0, %v780
        %v782 = vpop.f32.mrb[0].mxu0
        %783 = vdwg.mxu0
        %v784 = vmul.f32 %v409, %v706
        %v785 = vmul.f32 %v414, %v711
        %v786 = vmul.f32 %v419, %v716
        %v787 = vmul.f32 %v424, %v721
        %v788 = vmul.f32 %v429, %v726
        %v789 = vmul.f32 %v434, %v731
        %v790 = vmul.f32 %v439, %v736
        %v791 = vmul.f32 %v444, %v741
        %v792 = vmul.f32 %v449, %v746
        %v793 = vmul.f32 %v454, %v751
        %v794 = vmul.f32 %v459, %v756
        %v795 = vmul.f32 %v464, %v761
        %v796 = vmul.f32 %v469, %v766
        %v797 = vmul.f32 %v474, %v771
        %v798 = vmul.f32 %v479, %v776
        %v799 = vmul.f32 %v484, %v781
        %800 = vadd.xlane.f32.xlu0 %v784
        %v801 = vpop.xlane.xlu0 %800
        %802 = vadd.xlane.f32.xlu0 %v785
        %v803 = vpop.xlane.xlu0 %802
        %804 = vadd.xlane.f32.xlu0 %v786
        %v805 = vpop.xlane.xlu0 %804
        %806 = vadd.xlane.f32.xlu0 %v787
        %v807 = vpop.xlane.xlu0 %806
        %808 = vadd.xlane.f32.xlu0 %v788
        %v809 = vpop.xlane.xlu0 %808
        %810 = vadd.xlane.f32.xlu0 %v789
        %v811 = vpop.xlane.xlu0 %810
        %812 = vadd.xlane.f32.xlu0 %v790
        %v813 = vpop.xlane.xlu0 %812
        %814 = vadd.xlane.f32.xlu0 %v791
        %v815 = vpop.xlane.xlu0 %814
        %816 = vadd.xlane.f32.xlu0 %v792
        %v817 = vpop.xlane.xlu0 %816
        %818 = vadd.xlane.f32.xlu0 %v793
        %v819 = vpop.xlane.xlu0 %818
        %820 = vadd.xlane.f32.xlu0 %v794
        %v821 = vpop.xlane.xlu0 %820
        %822 = vadd.xlane.f32.xlu0 %v795
        %v823 = vpop.xlane.xlu0 %822
        %824 = vadd.xlane.f32.xlu0 %v796
        %v825 = vpop.xlane.xlu0 %824
        %826 = vadd.xlane.f32.xlu0 %v797
        %v827 = vpop.xlane.xlu0 %826
        %828 = vadd.xlane.f32.xlu0 %v798
        %v829 = vpop.xlane.xlu0 %828
        %830 = vadd.xlane.f32.xlu0 %v799
        %v831 = vpop.xlane.xlu0 %830
        %v832 = vmin.f32 %v801, 0.0
        %v833 = vmin.f32 %v803, 0.0
        %v834 = vmin.f32 %v805, 0.0
        %v835 = vmin.f32 %v807, 0.0
        %v836 = vmin.f32 %v809, 0.0
        %v837 = vmin.f32 %v811, 0.0
        %v838 = vmin.f32 %v813, 0.0
        %v839 = vmin.f32 %v815, 0.0
        %v840 = vmin.f32 %v817, 0.0
        %v841 = vmin.f32 %v819, 0.0
        %v842 = vmin.f32 %v821, 0.0
        %v843 = vmin.f32 %v823, 0.0
        %v844 = vmin.f32 %v825, 0.0
        %v845 = vmin.f32 %v827, 0.0
        %v846 = vmin.f32 %v829, 0.0
        %v847 = vmin.f32 %v831, 0.0
        %v848 = vand.u32 2147483647, %v801
        %v849 = vand.u32 2147483647, %v803
        %v850 = vand.u32 2147483647, %v805
        %v851 = vand.u32 2147483647, %v807
        %v852 = vand.u32 2147483647, %v809
        %v853 = vand.u32 2147483647, %v811
        %v854 = vand.u32 2147483647, %v813
        %v855 = vand.u32 2147483647, %v815
        %v856 = vand.u32 2147483647, %v817
        %v857 = vand.u32 2147483647, %v819
        %v858 = vand.u32 2147483647, %v821
        %v859 = vand.u32 2147483647, %v823
        %v860 = vand.u32 2147483647, %v825
        %v861 = vand.u32 2147483647, %v827
        %v862 = vand.u32 2147483647, %v829
        %v863 = vand.u32 2147483647, %v831
        %v864 = vsub.f32 0.0, %v848
        %v865 = vsub.f32 0.0, %v849
        %v866 = vsub.f32 0.0, %v850
        %v867 = vsub.f32 0.0, %v851
        %v868 = vsub.f32 0.0, %v852
        %v869 = vsub.f32 0.0, %v853
        %v870 = vsub.f32 0.0, %v854
        %v871 = vsub.f32 0.0, %v855
        %v872 = vsub.f32 0.0, %v856
        %v873 = vsub.f32 0.0, %v857
        %v874 = vsub.f32 0.0, %v858
        %v875 = vsub.f32 0.0, %v859
        %v876 = vsub.f32 0.0, %v860
        %v877 = vsub.f32 0.0, %v861
        %v878 = vsub.f32 0.0, %v862
        %v879 = vsub.f32 0.0, %v863
        %v880 = vmul.f32 %v864, 1.442695
        %v881 = vpow.pop %v880
        %v882 = vmul.f32 %v865, 1.442695
        %v883 = vpow.pop %v882
        %v884 = vmul.f32 %v866, 1.442695
        %v885 = vpow.pop %v884
        %v886 = vmul.f32 %v867, 1.442695
        %v887 = vpow.pop %v886
        %v888 = vmul.f32 %v868, 1.442695
        %v889 = vpow.pop %v888
        %v890 = vmul.f32 %v869, 1.442695
        %v891 = vpow.pop %v890
        %v892 = vmul.f32 %v870, 1.442695
        %v893 = vpow.pop %v892
        %v894 = vmul.f32 %v871, 1.442695
        %v895 = vpow.pop %v894
        %v896 = vmul.f32 %v872, 1.442695
        %v897 = vpow.pop %v896
        %v898 = vmul.f32 %v873, 1.442695
        %v899 = vpow.pop %v898
        %v900 = vmul.f32 %v874, 1.442695
        %v901 = vpow.pop %v900
        %v902 = vmul.f32 %v875, 1.442695
        %v903 = vpow.pop %v902
        %v904 = vmul.f32 %v876, 1.442695
        %v905 = vpow.pop %v904
        %v906 = vmul.f32 %v877, 1.442695
        %v907 = vpow.pop %v906
        %v908 = vmul.f32 %v878, 1.442695
        %v909 = vpow.pop %v908
        %v910 = vmul.f32 %v879, 1.442695
        %v911 = vpow.pop %v910
        %v912 = vadd.f32 %v881, 1.0
        %v913 = vlog2.pop %v912
        %v914 = vmul.f32 %v913, 0.6931472
        %v915 = vmul.f32 -0.5, %v881
        %v916 = vadd.f32 %v915, 1.0
        %v917 = vmul.f32 %v916, %v881
        %v918 = vand.u32 2147483647, %v881
        %vm919 = vcmp.lt.f32.partialorder %v918, 0.0004427343
        %v920 = vsel %vm919, %v917, %v914
        %v921 = vadd.f32 %v883, 1.0
        %v922 = vlog2.pop %v921
        %v923 = vmul.f32 %v922, 0.6931472
        %v924 = vmul.f32 -0.5, %v883
        %v925 = vadd.f32 %v924, 1.0
        %v926 = vmul.f32 %v925, %v883
        %v927 = vand.u32 2147483647, %v883
        %vm928 = vcmp.lt.f32.partialorder %v927, 0.0004427343
        %v929 = vsel %vm928, %v926, %v923
        %v930 = vadd.f32 %v885, 1.0
        %v931 = vlog2.pop %v930
        %v932 = vmul.f32 %v931, 0.6931472
        %v933 = vmul.f32 -0.5, %v885
        %v934 = vadd.f32 %v933, 1.0
        %v935 = vmul.f32 %v934, %v885
        %v936 = vand.u32 2147483647, %v885
        %vm937 = vcmp.lt.f32.partialorder %v936, 0.0004427343
        %v938 = vsel %vm937, %v935, %v932
        %v939 = vadd.f32 %v887, 1.0
        %v940 = vlog2.pop %v939
        %v941 = vmul.f32 %v940, 0.6931472
        %v942 = vmul.f32 -0.5, %v887
        %v943 = vadd.f32 %v942, 1.0
        %v944 = vmul.f32 %v943, %v887
        %v945 = vand.u32 2147483647, %v887
        %vm946 = vcmp.lt.f32.partialorder %v945, 0.0004427343
        %v947 = vsel %vm946, %v944, %v941
        %v948 = vadd.f32 %v889, 1.0
        %v949 = vlog2.pop %v948
        %v950 = vmul.f32 %v949, 0.6931472
        %v951 = vmul.f32 -0.5, %v889
        %v952 = vadd.f32 %v951, 1.0
        %v953 = vmul.f32 %v952, %v889
        %v954 = vand.u32 2147483647, %v889
        %vm955 = vcmp.lt.f32.partialorder %v954, 0.0004427343
        %v956 = vsel %vm955, %v953, %v950
        %v957 = vadd.f32 %v891, 1.0
        %v958 = vlog2.pop %v957
        %v959 = vmul.f32 %v958, 0.6931472
        %v960 = vmul.f32 -0.5, %v891
        %v961 = vadd.f32 %v960, 1.0
        %v962 = vmul.f32 %v961, %v891
        %v963 = vand.u32 2147483647, %v891
        %vm964 = vcmp.lt.f32.partialorder %v963, 0.0004427343
        %v965 = vsel %vm964, %v962, %v959
        %v966 = vadd.f32 %v893, 1.0
        %v967 = vlog2.pop %v966
        %v968 = vmul.f32 %v967, 0.6931472
        %v969 = vmul.f32 -0.5, %v893
        %v970 = vadd.f32 %v969, 1.0
        %v971 = vmul.f32 %v970, %v893
        %v972 = vand.u32 2147483647, %v893
        %vm973 = vcmp.lt.f32.partialorder %v972, 0.0004427343
        %v974 = vsel %vm973, %v971, %v968
        %v975 = vadd.f32 %v895, 1.0
        %v976 = vlog2.pop %v975
        %v977 = vmul.f32 %v976, 0.6931472
        %v978 = vmul.f32 -0.5, %v895
        %v979 = vadd.f32 %v978, 1.0
        %v980 = vmul.f32 %v979, %v895
        %v981 = vand.u32 2147483647, %v895
        %vm982 = vcmp.lt.f32.partialorder %v981, 0.0004427343
        %v983 = vsel %vm982, %v980, %v977
        %v984 = vadd.f32 %v897, 1.0
        %v985 = vlog2.pop %v984
        %v986 = vmul.f32 %v985, 0.6931472
        %v987 = vmul.f32 -0.5, %v897
        %v988 = vadd.f32 %v987, 1.0
        %v989 = vmul.f32 %v988, %v897
        %v990 = vand.u32 2147483647, %v897
        %vm991 = vcmp.lt.f32.partialorder %v990, 0.0004427343
        %v992 = vsel %vm991, %v989, %v986
        %v993 = vadd.f32 %v899, 1.0
        %v994 = vlog2.pop %v993
        %v995 = vmul.f32 %v994, 0.6931472
        %v996 = vmul.f32 -0.5, %v899
        %v997 = vadd.f32 %v996, 1.0
        %v998 = vmul.f32 %v997, %v899
        %v999 = vand.u32 2147483647, %v899
        %vm1000 = vcmp.lt.f32.partialorder %v999, 0.0004427343
        %v1001 = vsel %vm1000, %v998, %v995
        %v1002 = vadd.f32 %v901, 1.0
        %v1003 = vlog2.pop %v1002
        %v1004 = vmul.f32 %v1003, 0.6931472
        %v1005 = vmul.f32 -0.5, %v901
        %v1006 = vadd.f32 %v1005, 1.0
        %v1007 = vmul.f32 %v1006, %v901
        %v1008 = vand.u32 2147483647, %v901
        %vm1009 = vcmp.lt.f32.partialorder %v1008, 0.0004427343
        %v1010 = vsel %vm1009, %v1007, %v1004
        %v1011 = vadd.f32 %v903, 1.0
        %v1012 = vlog2.pop %v1011
        %v1013 = vmul.f32 %v1012, 0.6931472
        %v1014 = vmul.f32 -0.5, %v903
        %v1015 = vadd.f32 %v1014, 1.0
        %v1016 = vmul.f32 %v1015, %v903
        %v1017 = vand.u32 2147483647, %v903
        %vm1018 = vcmp.lt.f32.partialorder %v1017, 0.0004427343
        %v1019 = vsel %vm1018, %v1016, %v1013
        %v1020 = vadd.f32 %v905, 1.0
        %v1021 = vlog2.pop %v1020
        %v1022 = vmul.f32 %v1021, 0.6931472
        %v1023 = vmul.f32 -0.5, %v905
        %v1024 = vadd.f32 %v1023, 1.0
        %v1025 = vmul.f32 %v1024, %v905
        %v1026 = vand.u32 2147483647, %v905
        %vm1027 = vcmp.lt.f32.partialorder %v1026, 0.0004427343
        %v1028 = vsel %vm1027, %v1025, %v1022
        %v1029 = vadd.f32 %v907, 1.0
        %v1030 = vlog2.pop %v1029
        %v1031 = vmul.f32 %v1030, 0.6931472
        %v1032 = vmul.f32 -0.5, %v907
        %v1033 = vadd.f32 %v1032, 1.0
        %v1034 = vmul.f32 %v1033, %v907
        %v1035 = vand.u32 2147483647, %v907
        %vm1036 = vcmp.lt.f32.partialorder %v1035, 0.0004427343
        %v1037 = vsel %vm1036, %v1034, %v1031
        %v1038 = vadd.f32 %v909, 1.0
        %v1039 = vlog2.pop %v1038
        %v1040 = vmul.f32 %v1039, 0.6931472
        %v1041 = vmul.f32 -0.5, %v909
        %v1042 = vadd.f32 %v1041, 1.0
        %v1043 = vmul.f32 %v1042, %v909
        %v1044 = vand.u32 2147483647, %v909
        %vm1045 = vcmp.lt.f32.partialorder %v1044, 0.0004427343
        %v1046 = vsel %vm1045, %v1043, %v1040
        %v1047 = vadd.f32 %v911, 1.0
        %v1048 = vlog2.pop %v1047
        %v1049 = vmul.f32 %v1048, 0.6931472
        %v1050 = vmul.f32 -0.5, %v911
        %v1051 = vadd.f32 %v1050, 1.0
        %v1052 = vmul.f32 %v1051, %v911
        %v1053 = vand.u32 2147483647, %v911
        %vm1054 = vcmp.lt.f32.partialorder %v1053, 0.0004427343
        %v1055 = vsel %vm1054, %v1052, %v1049
        %v1056 = vsub.f32 %v832, %v920
        %v1057 = vsub.f32 %v833, %v929
        %v1058 = vsub.f32 %v834, %v938
        %v1059 = vsub.f32 %v835, %v947
        %v1060 = vsub.f32 %v836, %v956
        %v1061 = vsub.f32 %v837, %v965
        %v1062 = vsub.f32 %v838, %v974
        %v1063 = vsub.f32 %v839, %v983
        %v1064 = vsub.f32 %v840, %v992
        %v1065 = vsub.f32 %v841, %v1001
        %v1066 = vsub.f32 %v842, %v1010
        %v1067 = vsub.f32 %v843, %v1019
        %v1068 = vsub.f32 %v844, %v1028
        %v1069 = vsub.f32 %v845, %v1037
        %v1070 = vsub.f32 %v846, %v1046
        %v1071 = vsub.f32 %v847, %v1055
        %v1072 = vadd.f32 %v1056, 0.0
        %v1073 = vadd.f32 %v1057, 0.0
        %v1074 = vadd.f32 %v1058, 0.0
        %v1075 = vadd.f32 %v1059, 0.0
        %v1076 = vadd.f32 %v1060, 0.0
        %v1077 = vadd.f32 %v1061, 0.0
        %v1078 = vadd.f32 %v1062, 0.0
        %v1079 = vadd.f32 %v1063, 0.0
        %v1080 = vadd.f32 %v1064, 0.0
        %v1081 = vadd.f32 %v1065, 0.0
        %v1082 = vadd.f32 %v1066, 0.0
        %v1083 = vadd.f32 %v1067, 0.0
        %v1084 = vadd.f32 %v1068, 0.0
        %v1085 = vadd.f32 %v1069, 0.0
        %v1086 = vadd.f32 %v1070, 0.0
        %v1087 = vadd.f32 %v1071, 0.0
        %1088 = vset.pattern.permute.xlu0 2
        %1089 = vperm.xlu0 %1088, %v171
        %v1090 = vpop.permute.xlu0 %1089
        %1091 = vset.pattern.permute.xlu0 2
        %1092 = vperm.xlu0 %1091, %v172
        %v1093 = vpop.permute.xlu0 %1092
        %1094 = vset.pattern.permute.xlu0 2
        %1095 = vperm.xlu0 %1094, %v173
        %v1096 = vpop.permute.xlu0 %1095
        %1097 = vset.pattern.permute.xlu0 2
        %1098 = vperm.xlu0 %1097, %v174
        %v1099 = vpop.permute.xlu0 %1098
        %1100 = vset.pattern.permute.xlu0 2
        %1101 = vperm.xlu0 %1100, %v175
        %v1102 = vpop.permute.xlu0 %1101
        %1103 = vset.pattern.permute.xlu0 2
        %1104 = vperm.xlu0 %1103, %v176
        %v1105 = vpop.permute.xlu0 %1104
        %1106 = vset.pattern.permute.xlu0 2
        %1107 = vperm.xlu0 %1106, %v177
        %v1108 = vpop.permute.xlu0 %1107
        %1109 = vset.pattern.permute.xlu0 2
        %1110 = vperm.xlu0 %1109, %v178
        %v1111 = vpop.permute.xlu0 %1110
        %1112 = vset.pattern.permute.xlu0 2
        %1113 = vperm.xlu0 %1112, %v179
        %v1114 = vpop.permute.xlu0 %1113
        %1115 = vset.pattern.permute.xlu0 2
        %1116 = vperm.xlu0 %1115, %v180
        %v1117 = vpop.permute.xlu0 %1116
        %1118 = vset.pattern.permute.xlu0 2
        %1119 = vperm.xlu0 %1118, %v181
        %v1120 = vpop.permute.xlu0 %1119
        %1121 = vset.pattern.permute.xlu0 2
        %1122 = vperm.xlu0 %1121, %v182
        %v1123 = vpop.permute.xlu0 %1122
        %1124 = vset.pattern.permute.xlu0 2
        %1125 = vperm.xlu0 %1124, %v183
        %v1126 = vpop.permute.xlu0 %1125
        %1127 = vset.pattern.permute.xlu0 2
        %1128 = vperm.xlu0 %1127, %v184
        %v1129 = vpop.permute.xlu0 %1128
        %1130 = vset.pattern.permute.xlu0 2
        %1131 = vperm.xlu0 %1130, %v185
        %v1132 = vpop.permute.xlu0 %1131
        %1133 = vset.pattern.permute.xlu0 2
        %1134 = vperm.xlu0 %1133, %v186
        %v1135 = vpop.permute.xlu0 %1134
        %vm1136 = vcmp.eq.s32.totalorder %v1090, %v188
        %vm1137 = vcmp.eq.s32.totalorder %v1093, %v188
        %vm1138 = vcmp.eq.s32.totalorder %v1096, %v188
        %vm1139 = vcmp.eq.s32.totalorder %v1099, %v188
        %vm1140 = vcmp.eq.s32.totalorder %v1102, %v188
        %vm1141 = vcmp.eq.s32.totalorder %v1105, %v188
        %vm1142 = vcmp.eq.s32.totalorder %v1108, %v188
        %vm1143 = vcmp.eq.s32.totalorder %v1111, %v188
        %vm1144 = vcmp.eq.s32.totalorder %v1114, %v188
        %vm1145 = vcmp.eq.s32.totalorder %v1117, %v188
        %vm1146 = vcmp.eq.s32.totalorder %v1120, %v188
        %vm1147 = vcmp.eq.s32.totalorder %v1123, %v188
        %vm1148 = vcmp.eq.s32.totalorder %v1126, %v188
        %vm1149 = vcmp.eq.s32.totalorder %v1129, %v188
        %vm1150 = vcmp.eq.s32.totalorder %v1132, %v188
        %vm1151 = vcmp.eq.s32.totalorder %v1135, %v188
        %v1152 = vsel %vm1136, 1, 0
        %v1153 = vsel %vm1137, 1, 0
        %v1154 = vsel %vm1138, 1, 0
        %v1155 = vsel %vm1139, 1, 0
        %v1156 = vsel %vm1140, 1, 0
        %v1157 = vsel %vm1141, 1, 0
        %v1158 = vsel %vm1142, 1, 0
        %v1159 = vsel %vm1143, 1, 0
        %v1160 = vsel %vm1144, 1, 0
        %v1161 = vsel %vm1145, 1, 0
        %v1162 = vsel %vm1146, 1, 0
        %v1163 = vsel %vm1147, 1, 0
        %v1164 = vsel %vm1148, 1, 0
        %v1165 = vsel %vm1149, 1, 0
        %v1166 = vsel %vm1150, 1, 0
        %v1167 = vsel %vm1151, 1, 0
        %v1168 = vcvt.s32.f32 %v1152
        %v1169 = vcvt.s32.f32 %v1153
        %v1170 = vcvt.s32.f32 %v1154
        %v1171 = vcvt.s32.f32 %v1155
        %v1172 = vcvt.s32.f32 %v1156
        %v1173 = vcvt.s32.f32 %v1157
        %v1174 = vcvt.s32.f32 %v1158
        %v1175 = vcvt.s32.f32 %v1159
        %v1176 = vcvt.s32.f32 %v1160
        %v1177 = vcvt.s32.f32 %v1161
        %v1178 = vcvt.s32.f32 %v1162
        %v1179 = vcvt.s32.f32 %v1163
        %v1180 = vcvt.s32.f32 %v1164
        %v1181 = vcvt.s32.f32 %v1165
        %v1182 = vcvt.s32.f32 %v1166
        %v1183 = vcvt.s32.f32 %v1167
        %v1185 = vsel %vm293, %v1168, 0
        %v1188 = vsel %vm293, %v1169, 0
        %v1191 = vsel %vm293, %v1170, 0
        %v1194 = vsel %vm293, %v1171, 0
        %v1197 = vsel %vm293, %v1172, 0
        %v1200 = vsel %vm293, %v1173, 0
        %v1203 = vsel %vm293, %v1174, 0
        %v1206 = vsel %vm293, %v1175, 0
        %v1209 = vsel %vm293, %v1176, 0
        %v1212 = vsel %vm293, %v1177, 0
        %v1215 = vsel %vm293, %v1178, 0
        %v1218 = vsel %vm293, %v1179, 0
        %v1221 = vsel %vm293, %v1180, 0
        %v1224 = vsel %vm293, %v1181, 0
        %v1227 = vsel %vm293, %v1182, 0
        %v1230 = vsel %vm293, %v1183, 0
        %1232 = vmatprep.subr.mxu0 0.0
        %1233 = vmatpush1.msra.mxu0 %v487
        %1234 = vmatprep.subr.mxu0 0.0
        %1235 = vmatpush1.msra.mxu0 %v488
        %1236 = vmatprep.subr.mxu0 0.0
        %1237 = vmatpush1.msra.mxu0 %v489
        %1238 = vmatprep.subr.mxu0 0.0
        %1239 = vmatpush1.msra.mxu0 %v490
        %1240 = vmatprep.subr.mxu0 0.0
        %1241 = vmatpush1.msra.mxu0 %v491
        %1242 = vmatprep.subr.mxu0 0.0
        %1243 = vmatpush1.msra.mxu0 %v492
        %1244 = vmatprep.subr.mxu0 0.0
        %1245 = vmatpush1.msra.mxu0 %v493
        %1246 = vmatprep.subr.mxu0 0.0
        %1247 = vmatpush1.msra.mxu0 %v494
        %1248 = vmatprep.subr.mxu0 0.0
        %1249 = vmatpush1.msra.mxu0 0.0
        %1250 = vmatprep.subr.mxu0 0.0
        %1251 = vmatpush1.msra.mxu0 0.0
        %1252 = vmatprep.subr.mxu0 0.0
        %1253 = vmatpush1.msra.mxu0 0.0
        %1254 = vmatprep.subr.mxu0 0.0
        %1255 = vmatpush1.msra.mxu0 0.0
        %1256 = vmatprep.subr.mxu0 0.0
        %1257 = vmatpush1.msra.mxu0 0.0
        %1258 = vmatprep.subr.mxu0 0.0
        %1259 = vmatpush1.msra.mxu0 0.0
        %1260 = vmatprep.subr.mxu0 0.0
        %1261 = vmatpush1.msra.mxu0 0.0
        %1262 = vmatprep.subr.mxu0 0.0
        %1263 = vmatpush1.msra.mxu0 0.0
        %1264 = vmatprep.subr.mxu0 0.0
        %1265 = vmatpush1.msra.mxu0 0.0
        %1266 = vmatprep.subr.mxu0 0.0
        %1267 = vmatpush1.msra.mxu0 0.0
        %1268 = vmatprep.subr.mxu0 0.0
        %1269 = vmatpush1.msra.mxu0 0.0
        %1270 = vmatprep.subr.mxu0 0.0
        %1271 = vmatpush1.msra.mxu0 0.0
        %1272 = vmatprep.subr.mxu0 0.0
        %1273 = vmatpush1.msra.mxu0 0.0
        %1274 = vmatprep.subr.mxu0 0.0
        %1275 = vmatpush1.msra.mxu0 0.0
        %1276 = vmatprep.subr.mxu0 0.0
        %1277 = vmatpush1.msra.mxu0 0.0
        %1278 = vmatprep.subr.mxu0 0.0
        %1279 = vmatpush1.msra.mxu0 0.0
        %1280 = vmatprep.subr.mxu0 0.0
        %1281 = vmatpush1.msra.mxu0 0.0
        %1282 = vmatprep.subr.mxu0 0.0
        %1283 = vmatpush1.msra.mxu0 0.0
        %1284 = vmatprep.subr.mxu0 0.0
        %1285 = vmatpush1.msra.mxu0 0.0
        %1286 = vmatprep.subr.mxu0 0.0
        %1287 = vmatpush1.msra.mxu0 0.0
        %1288 = vmatprep.subr.mxu0 0.0
        %1289 = vmatpush1.msra.mxu0 0.0
        %1290 = vmatprep.subr.mxu0 0.0
        %1291 = vmatpush1.msra.mxu0 0.0
        %1292 = vmatprep.subr.mxu0 0.0
        %1293 = vmatpush1.msra.mxu0 0.0
        %1294 = vmatprep.subr.mxu0 0.0
        %1295 = vmatpush1.msra.mxu0 0.0
        %1296 = vmatprep.mubr.f32.mxu0 0.0
        %1297 = vmatmul.mubr.f32.gmra.mrb[0].mxu0 %v1185
        %v1298 = vpop.f32.mrb[0].mxu0
        %v1299 = vadd.f32 0.0, %v1298
        %v1300 = vpop.f32.mrb[0].mxu0
        %1301 = vmatprep.mubr.f32.mxu0 0.0
        %1302 = vmatmul.mubr.f32.gmra.mrb[0].mxu0 %v1188
        %v1303 = vpop.f32.mrb[0].mxu0
        %v1304 = vadd.f32 0.0, %v1303
        %v1305 = vpop.f32.mrb[0].mxu0
        %1306 = vmatprep.mubr.f32.mxu0 0.0
        %1307 = vmatmul.mubr.f32.gmra.mrb[0].mxu0 %v1191
        %v1308 = vpop.f32.mrb[0].mxu0
        %v1309 = vadd.f32 0.0, %v1308
        %v1310 = vpop.f32.mrb[0].mxu0
        %1311 = vmatprep.mubr.f32.mxu0 0.0
        %1312 = vmatmul.mubr.f32.gmra.mrb[0].mxu0 %v1194
        %v1313 = vpop.f32.mrb[0].mxu0
        %v1314 = vadd.f32 0.0, %v1313
        %v1315 = vpop.f32.mrb[0].mxu0
        %1316 = vmatprep.mubr.f32.mxu0 0.0
        %1317 = vmatmul.mubr.f32.gmra.mrb[0].mxu0 %v1197
        %v1318 = vpop.f32.mrb[0].mxu0
        %v1319 = vadd.f32 0.0, %v1318
        %v1320 = vpop.f32.mrb[0].mxu0
        %1321 = vmatprep.mubr.f32.mxu0 0.0
        %1322 = vmatmul.mubr.f32.gmra.mrb[0].mxu0 %v1200
        %v1323 = vpop.f32.mrb[0].mxu0
        %v1324 = vadd.f32 0.0, %v1323
        %v1325 = vpop.f32.mrb[0].mxu0
        %1326 = vmatprep.mubr.f32.mxu0 0.0
        %1327 = vmatmul.mubr.f32.gmra.mrb[0].mxu0 %v1203
        %v1328 = vpop.f32.mrb[0].mxu0
        %v1329 = vadd.f32 0.0, %v1328
        %v1330 = vpop.f32.mrb[0].mxu0
        %1331 = vmatprep.mubr.f32.mxu0 0.0
        %1332 = vmatmul.mubr.f32.gmra.mrb[0].mxu0 %v1206
        %v1333 = vpop.f32.mrb[0].mxu0
        %v1334 = vadd.f32 0.0, %v1333
        %v1335 = vpop.f32.mrb[0].mxu0
        %1336 = vmatprep.mubr.f32.mxu0 0.0
        %1337 = vmatmul.mubr.f32.gmra.mrb[0].mxu0 %v1209
        %v1338 = vpop.f32.mrb[0].mxu0
        %v1339 = vadd.f32 0.0, %v1338
        %v1340 = vpop.f32.mrb[0].mxu0
        %1341 = vmatprep.mubr.f32.mxu0 0.0
        %1342 = vmatmul.mubr.f32.gmra.mrb[0].mxu0 %v1212
        %v1343 = vpop.f32.mrb[0].mxu0
        %v1344 = vadd.f32 0.0, %v1343
        %v1345 = vpop.f32.mrb[0].mxu0
        %1346 = vmatprep.mubr.f32.mxu0 0.0
        %1347 = vmatmul.mubr.f32.gmra.mrb[0].mxu0 %v1215
        %v1348 = vpop.f32.mrb[0].mxu0
        %v1349 = vadd.f32 0.0, %v1348
        %v1350 = vpop.f32.mrb[0].mxu0
        %1351 = vmatprep.mubr.f32.mxu0 0.0
        %1352 = vmatmul.mubr.f32.gmra.mrb[0].mxu0 %v1218
        %v1353 = vpop.f32.mrb[0].mxu0
        %v1354 = vadd.f32 0.0, %v1353
        %v1355 = vpop.f32.mrb[0].mxu0
        %1356 = vmatprep.mubr.f32.mxu0 0.0
        %1357 = vmatmul.mubr.f32.gmra.mrb[0].mxu0 %v1221
        %v1358 = vpop.f32.mrb[0].mxu0
        %v1359 = vadd.f32 0.0, %v1358
        %v1360 = vpop.f32.mrb[0].mxu0
        %1361 = vmatprep.mubr.f32.mxu0 0.0
        %1362 = vmatmul.mubr.f32.gmra.mrb[0].mxu0 %v1224
        %v1363 = vpop.f32.mrb[0].mxu0
        %v1364 = vadd.f32 0.0, %v1363
        %v1365 = vpop.f32.mrb[0].mxu0
        %1366 = vmatprep.mubr.f32.mxu0 0.0
        %1367 = vmatmul.mubr.f32.gmra.mrb[0].mxu0 %v1227
        %v1368 = vpop.f32.mrb[0].mxu0
        %v1369 = vadd.f32 0.0, %v1368
        %v1370 = vpop.f32.mrb[0].mxu0
        %1371 = vmatprep.mubr.f32.mxu0 0.0
        %1372 = vmatmul.mubr.f32.gmra.mrb[0].mxu0 %v1230
        %v1373 = vpop.f32.mrb[0].mxu0
        %v1374 = vadd.f32 0.0, %v1373
        %v1375 = vpop.f32.mrb[0].mxu0
        %1376 = vdwg.mxu0
        %v1377 = vmul.f32 %v409, %v1299
        %v1378 = vmul.f32 %v414, %v1304
        %v1379 = vmul.f32 %v419, %v1309
        %v1380 = vmul.f32 %v424, %v1314
        %v1381 = vmul.f32 %v429, %v1319
        %v1382 = vmul.f32 %v434, %v1324
        %v1383 = vmul.f32 %v439, %v1329
        %v1384 = vmul.f32 %v444, %v1334
        %v1385 = vmul.f32 %v449, %v1339
        %v1386 = vmul.f32 %v454, %v1344
        %v1387 = vmul.f32 %v459, %v1349
        %v1388 = vmul.f32 %v464, %v1354
        %v1389 = vmul.f32 %v469, %v1359
        %v1390 = vmul.f32 %v474, %v1364
        %v1391 = vmul.f32 %v479, %v1369
        %v1392 = vmul.f32 %v484, %v1374
        %1393 = vadd.xlane.f32.xlu0 %v1377
        %v1394 = vpop.xlane.xlu0 %1393
        %1395 = vadd.xlane.f32.xlu0 %v1378
        %v1396 = vpop.xlane.xlu0 %1395
        %1397 = vadd.xlane.f32.xlu0 %v1379
        %v1398 = vpop.xlane.xlu0 %1397
        %1399 = vadd.xlane.f32.xlu0 %v1380
        %v1400 = vpop.xlane.xlu0 %1399
        %1401 = vadd.xlane.f32.xlu0 %v1381
        %v1402 = vpop.xlane.xlu0 %1401
        %1403 = vadd.xlane.f32.xlu0 %v1382
        %v1404 = vpop.xlane.xlu0 %1403
        %1405 = vadd.xlane.f32.xlu0 %v1383
        %v1406 = vpop.xlane.xlu0 %1405
        %1407 = vadd.xlane.f32.xlu0 %v1384
        %v1408 = vpop.xlane.xlu0 %1407
        %1409 = vadd.xlane.f32.xlu0 %v1385
        %v1410 = vpop.xlane.xlu0 %1409
        %1411 = vadd.xlane.f32.xlu0 %v1386
        %v1412 = vpop.xlane.xlu0 %1411
        %1413 = vadd.xlane.f32.xlu0 %v1387
        %v1414 = vpop.xlane.xlu0 %1413
        %1415 = vadd.xlane.f32.xlu0 %v1388
        %v1416 = vpop.xlane.xlu0 %1415
        %1417 = vadd.xlane.f32.xlu0 %v1389
        %v1418 = vpop.xlane.xlu0 %1417
        %1419 = vadd.xlane.f32.xlu0 %v1390
        %v1420 = vpop.xlane.xlu0 %1419
        %1421 = vadd.xlane.f32.xlu0 %v1391
        %v1422 = vpop.xlane.xlu0 %1421
        %1423 = vadd.xlane.f32.xlu0 %v1392
        %v1424 = vpop.xlane.xlu0 %1423
        %v1425 = vsub.f32 0.0, %v1394
        %v1426 = vsub.f32 0.0, %v1396
        %v1427 = vsub.f32 0.0, %v1398
        %v1428 = vsub.f32 0.0, %v1400
        %v1429 = vsub.f32 0.0, %v1402
        %v1430 = vsub.f32 0.0, %v1404
        %v1431 = vsub.f32 0.0, %v1406
        %v1432 = vsub.f32 0.0, %v1408
        %v1433 = vsub.f32 0.0, %v1410
        %v1434 = vsub.f32 0.0, %v1412
        %v1435 = vsub.f32 0.0, %v1414
        %v1436 = vsub.f32 0.0, %v1416
        %v1437 = vsub.f32 0.0, %v1418
        %v1438 = vsub.f32 0.0, %v1420
        %v1439 = vsub.f32 0.0, %v1422
        %v1440 = vsub.f32 0.0, %v1424
        %v1441 = vmin.f32 %v1425, 0.0
        %v1442 = vmin.f32 %v1426, 0.0
        %v1443 = vmin.f32 %v1427, 0.0
        %v1444 = vmin.f32 %v1428, 0.0
        %v1445 = vmin.f32 %v1429, 0.0
        %v1446 = vmin.f32 %v1430, 0.0
        %v1447 = vmin.f32 %v1431, 0.0
        %v1448 = vmin.f32 %v1432, 0.0
        %v1449 = vmin.f32 %v1433, 0.0
        %v1450 = vmin.f32 %v1434, 0.0
        %v1451 = vmin.f32 %v1435, 0.0
        %v1452 = vmin.f32 %v1436, 0.0
        %v1453 = vmin.f32 %v1437, 0.0
        %v1454 = vmin.f32 %v1438, 0.0
        %v1455 = vmin.f32 %v1439, 0.0
        %v1456 = vmin.f32 %v1440, 0.0
        %v1457 = vand.u32 2147483647, %v1425
        %v1458 = vand.u32 2147483647, %v1426
        %v1459 = vand.u32 2147483647, %v1427
        %v1460 = vand.u32 2147483647, %v1428
        %v1461 = vand.u32 2147483647, %v1429
        %v1462 = vand.u32 2147483647, %v1430
        %v1463 = vand.u32 2147483647, %v1431
        %v1464 = vand.u32 2147483647, %v1432
        %v1465 = vand.u32 2147483647, %v1433
        %v1466 = vand.u32 2147483647, %v1434
        %v1467 = vand.u32 2147483647, %v1435
        %v1468 = vand.u32 2147483647, %v1436
        %v1469 = vand.u32 2147483647, %v1437
        %v1470 = vand.u32 2147483647, %v1438
        %v1471 = vand.u32 2147483647, %v1439
        %v1472 = vand.u32 2147483647, %v1440
        %v1473 = vsub.f32 0.0, %v1457
        %v1474 = vsub.f32 0.0, %v1458
        %v1475 = vsub.f32 0.0, %v1459
        %v1476 = vsub.f32 0.0, %v1460
        %v1477 = vsub.f32 0.0, %v1461
        %v1478 = vsub.f32 0.0, %v1462
        %v1479 = vsub.f32 0.0, %v1463
        %v1480 = vsub.f32 0.0, %v1464
        %v1481 = vsub.f32 0.0, %v1465
        %v1482 = vsub.f32 0.0, %v1466
        %v1483 = vsub.f32 0.0, %v1467
        %v1484 = vsub.f32 0.0, %v1468
        %v1485 = vsub.f32 0.0, %v1469
        %v1486 = vsub.f32 0.0, %v1470
        %v1487 = vsub.f32 0.0, %v1471
        %v1488 = vsub.f32 0.0, %v1472
        %v1489 = vmul.f32 %v1473, 1.442695
        %v1490 = vpow.pop %v1489
        %v1491 = vmul.f32 %v1474, 1.442695
        %v1492 = vpow.pop %v1491
        %v1493 = vmul.f32 %v1475, 1.442695
        %v1494 = vpow.pop %v1493
        %v1495 = vmul.f32 %v1476, 1.442695
        %v1496 = vpow.pop %v1495
        %v1497 = vmul.f32 %v1477, 1.442695
        %v1498 = vpow.pop %v1497
        %v1499 = vmul.f32 %v1478, 1.442695
        %v1500 = vpow.pop %v1499
        %v1501 = vmul.f32 %v1479, 1.442695
        %v1502 = vpow.pop %v1501
        %v1503 = vmul.f32 %v1480, 1.442695
        %v1504 = vpow.pop %v1503
        %v1505 = vmul.f32 %v1481, 1.442695
        %v1506 = vpow.pop %v1505
        %v1507 = vmul.f32 %v1482, 1.442695
        %v1508 = vpow.pop %v1507
        %v1509 = vmul.f32 %v1483, 1.442695
        %v1510 = vpow.pop %v1509
        %v1511 = vmul.f32 %v1484, 1.442695
        %v1512 = vpow.pop %v1511
        %v1513 = vmul.f32 %v1485, 1.442695
        %v1514 = vpow.pop %v1513
        %v1515 = vmul.f32 %v1486, 1.442695
        %v1516 = vpow.pop %v1515
        %v1517 = vmul.f32 %v1487, 1.442695
        %v1518 = vpow.pop %v1517
        %v1519 = vmul.f32 %v1488, 1.442695
        %v1520 = vpow.pop %v1519
        %v1521 = vadd.f32 %v1490, 1.0
        %v1522 = vlog2.pop %v1521
        %v1523 = vmul.f32 %v1522, 0.6931472
        %v1524 = vmul.f32 -0.5, %v1490
        %v1525 = vadd.f32 %v1524, 1.0
        %v1526 = vmul.f32 %v1525, %v1490
        %v1527 = vand.u32 2147483647, %v1490
        %vm1528 = vcmp.lt.f32.partialorder %v1527, 0.0004427343
        %v1529 = vsel %vm1528, %v1526, %v1523
        %v1530 = vadd.f32 %v1492, 1.0
        %v1531 = vlog2.pop %v1530
        %v1532 = vmul.f32 %v1531, 0.6931472
        %v1533 = vmul.f32 -0.5, %v1492
        %v1534 = vadd.f32 %v1533, 1.0
        %v1535 = vmul.f32 %v1534, %v1492
        %v1536 = vand.u32 2147483647, %v1492
        %vm1537 = vcmp.lt.f32.partialorder %v1536, 0.0004427343
        %v1538 = vsel %vm1537, %v1535, %v1532
        %v1539 = vadd.f32 %v1494, 1.0
        %v1540 = vlog2.pop %v1539
        %v1541 = vmul.f32 %v1540, 0.6931472
        %v1542 = vmul.f32 -0.5, %v1494
        %v1543 = vadd.f32 %v1542, 1.0
        %v1544 = vmul.f32 %v1543, %v1494
        %v1545 = vand.u32 2147483647, %v1494
        %vm1546 = vcmp.lt.f32.partialorder %v1545, 0.0004427343
        %v1547 = vsel %vm1546, %v1544, %v1541
        %v1548 = vadd.f32 %v1496, 1.0
        %v1549 = vlog2.pop %v1548
        %v1550 = vmul.f32 %v1549, 0.6931472
        %v1551 = vmul.f32 -0.5, %v1496
        %v1552 = vadd.f32 %v1551, 1.0
        %v1553 = vmul.f32 %v1552, %v1496
        %v1554 = vand.u32 2147483647, %v1496
        %vm1555 = vcmp.lt.f32.partialorder %v1554, 0.0004427343
        %v1556 = vsel %vm1555, %v1553, %v1550
        %v1557 = vadd.f32 %v1498, 1.0
        %v1558 = vlog2.pop %v1557
        %v1559 = vmul.f32 %v1558, 0.6931472
        %v1560 = vmul.f32 -0.5, %v1498
        %v1561 = vadd.f32 %v1560, 1.0
        %v1562 = vmul.f32 %v1561, %v1498
        %v1563 = vand.u32 2147483647, %v1498
        %vm1564 = vcmp.lt.f32.partialorder %v1563, 0.0004427343
        %v1565 = vsel %vm1564, %v1562, %v1559
        %v1566 = vadd.f32 %v1500, 1.0
        %v1567 = vlog2.pop %v1566
        %v1568 = vmul.f32 %v1567, 0.6931472
        %v1569 = vmul.f32 -0.5, %v1500
        %v1570 = vadd.f32 %v1569, 1.0
        %v1571 = vmul.f32 %v1570, %v1500
        %v1572 = vand.u32 2147483647, %v1500
        %vm1573 = vcmp.lt.f32.partialorder %v1572, 0.0004427343
        %v1574 = vsel %vm1573, %v1571, %v1568
        %v1575 = vadd.f32 %v1502, 1.0
        %v1576 = vlog2.pop %v1575
        %v1577 = vmul.f32 %v1576, 0.6931472
        %v1578 = vmul.f32 -0.5, %v1502
        %v1579 = vadd.f32 %v1578, 1.0
        %v1580 = vmul.f32 %v1579, %v1502
        %v1581 = vand.u32 2147483647, %v1502
        %vm1582 = vcmp.lt.f32.partialorder %v1581, 0.0004427343
        %v1583 = vsel %vm1582, %v1580, %v1577
        %v1584 = vadd.f32 %v1504, 1.0
        %v1585 = vlog2.pop %v1584
        %v1586 = vmul.f32 %v1585, 0.6931472
        %v1587 = vmul.f32 -0.5, %v1504
        %v1588 = vadd.f32 %v1587, 1.0
        %v1589 = vmul.f32 %v1588, %v1504
        %v1590 = vand.u32 2147483647, %v1504
        %vm1591 = vcmp.lt.f32.partialorder %v1590, 0.0004427343
        %v1592 = vsel %vm1591, %v1589, %v1586
        %v1593 = vadd.f32 %v1506, 1.0
        %v1594 = vlog2.pop %v1593
        %v1595 = vmul.f32 %v1594, 0.6931472
        %v1596 = vmul.f32 -0.5, %v1506
        %v1597 = vadd.f32 %v1596, 1.0
        %v1598 = vmul.f32 %v1597, %v1506
        %v1599 = vand.u32 2147483647, %v1506
        %vm1600 = vcmp.lt.f32.partialorder %v1599, 0.0004427343
        %v1601 = vsel %vm1600, %v1598, %v1595
        %v1602 = vadd.f32 %v1508, 1.0
        %v1603 = vlog2.pop %v1602
        %v1604 = vmul.f32 %v1603, 0.6931472
        %v1605 = vmul.f32 -0.5, %v1508
        %v1606 = vadd.f32 %v1605, 1.0
        %v1607 = vmul.f32 %v1606, %v1508
        %v1608 = vand.u32 2147483647, %v1508
        %vm1609 = vcmp.lt.f32.partialorder %v1608, 0.0004427343
        %v1610 = vsel %vm1609, %v1607, %v1604
        %v1611 = vadd.f32 %v1510, 1.0
        %v1612 = vlog2.pop %v1611
        %v1613 = vmul.f32 %v1612, 0.6931472
        %v1614 = vmul.f32 -0.5, %v1510
        %v1615 = vadd.f32 %v1614, 1.0
        %v1616 = vmul.f32 %v1615, %v1510
        %v1617 = vand.u32 2147483647, %v1510
        %vm1618 = vcmp.lt.f32.partialorder %v1617, 0.0004427343
        %v1619 = vsel %vm1618, %v1616, %v1613
        %v1620 = vadd.f32 %v1512, 1.0
        %v1621 = vlog2.pop %v1620
        %v1622 = vmul.f32 %v1621, 0.6931472
        %v1623 = vmul.f32 -0.5, %v1512
        %v1624 = vadd.f32 %v1623, 1.0
        %v1625 = vmul.f32 %v1624, %v1512
        %v1626 = vand.u32 2147483647, %v1512
        %vm1627 = vcmp.lt.f32.partialorder %v1626, 0.0004427343
        %v1628 = vsel %vm1627, %v1625, %v1622
        %v1629 = vadd.f32 %v1514, 1.0
        %v1630 = vlog2.pop %v1629
        %v1631 = vmul.f32 %v1630, 0.6931472
        %v1632 = vmul.f32 -0.5, %v1514
        %v1633 = vadd.f32 %v1632, 1.0
        %v1634 = vmul.f32 %v1633, %v1514
        %v1635 = vand.u32 2147483647, %v1514
        %vm1636 = vcmp.lt.f32.partialorder %v1635, 0.0004427343
        %v1637 = vsel %vm1636, %v1634, %v1631
        %v1638 = vadd.f32 %v1516, 1.0
        %v1639 = vlog2.pop %v1638
        %v1640 = vmul.f32 %v1639, 0.6931472
        %v1641 = vmul.f32 -0.5, %v1516
        %v1642 = vadd.f32 %v1641, 1.0
        %v1643 = vmul.f32 %v1642, %v1516
        %v1644 = vand.u32 2147483647, %v1516
        %vm1645 = vcmp.lt.f32.partialorder %v1644, 0.0004427343
        %v1646 = vsel %vm1645, %v1643, %v1640
        %v1647 = vadd.f32 %v1518, 1.0
        %v1648 = vlog2.pop %v1647
        %v1649 = vmul.f32 %v1648, 0.6931472
        %v1650 = vmul.f32 -0.5, %v1518
        %v1651 = vadd.f32 %v1650, 1.0
        %v1652 = vmul.f32 %v1651, %v1518
        %v1653 = vand.u32 2147483647, %v1518
        %vm1654 = vcmp.lt.f32.partialorder %v1653, 0.0004427343
        %v1655 = vsel %vm1654, %v1652, %v1649
        %v1656 = vadd.f32 %v1520, 1.0
        %v1657 = vlog2.pop %v1656
        %v1658 = vmul.f32 %v1657, 0.6931472
        %v1659 = vmul.f32 -0.5, %v1520
        %v1660 = vadd.f32 %v1659, 1.0
        %v1661 = vmul.f32 %v1660, %v1520
        %v1662 = vand.u32 2147483647, %v1520
        %vm1663 = vcmp.lt.f32.partialorder %v1662, 0.0004427343
        %v1664 = vsel %vm1663, %v1661, %v1658
        %v1665 = vsub.f32 %v1441, %v1529
        %v1666 = vsub.f32 %v1442, %v1538
        %v1667 = vsub.f32 %v1443, %v1547
        %v1668 = vsub.f32 %v1444, %v1556
        %v1669 = vsub.f32 %v1445, %v1565
        %v1670 = vsub.f32 %v1446, %v1574
        %v1671 = vsub.f32 %v1447, %v1583
        %v1672 = vsub.f32 %v1448, %v1592
        %v1673 = vsub.f32 %v1449, %v1601
        %v1674 = vsub.f32 %v1450, %v1610
        %v1675 = vsub.f32 %v1451, %v1619
        %v1676 = vsub.f32 %v1452, %v1628
        %v1677 = vsub.f32 %v1453, %v1637
        %v1678 = vsub.f32 %v1454, %v1646
        %v1679 = vsub.f32 %v1455, %v1655
        %v1680 = vsub.f32 %v1456, %v1664
        %v1681 = vadd.f32 %v1072, %v1665
        %v1682 = vadd.f32 %v1073, %v1666
        %v1683 = vadd.f32 %v1074, %v1667
        %v1684 = vadd.f32 %v1075, %v1668
        %v1685 = vadd.f32 %v1076, %v1669
        %v1686 = vadd.f32 %v1077, %v1670
        %v1687 = vadd.f32 %v1078, %v1671
        %v1688 = vadd.f32 %v1079, %v1672
        %v1689 = vadd.f32 %v1080, %v1673
        %v1690 = vadd.f32 %v1081, %v1674
        %v1691 = vadd.f32 %v1082, %v1675
        %v1692 = vadd.f32 %v1083, %v1676
        %v1693 = vadd.f32 %v1084, %v1677
        %v1694 = vadd.f32 %v1085, %v1678
        %v1695 = vadd.f32 %v1086, %v1679
        %v1696 = vadd.f32 %v1087, %v1680
        %1697 = vset.pattern.permute.xlu0 3
        %1698 = vperm.xlu0 %1697, %v171
        %v1699 = vpop.permute.xlu0 %1698
        %1700 = vset.pattern.permute.xlu0 3
        %1701 = vperm.xlu0 %1700, %v172
        %v1702 = vpop.permute.xlu0 %1701
        %1703 = vset.pattern.permute.xlu0 3
        %1704 = vperm.xlu0 %1703, %v173
        %v1705 = vpop.permute.xlu0 %1704
        %1706 = vset.pattern.permute.xlu0 3
        %1707 = vperm.xlu0 %1706, %v174
        %v1708 = vpop.permute.xlu0 %1707
        %1709 = vset.pattern.permute.xlu0 3
        %1710 = vperm.xlu0 %1709, %v175
        %v1711 = vpop.permute.xlu0 %1710
        %1712 = vset.pattern.permute.xlu0 3
        %1713 = vperm.xlu0 %1712, %v176
        %v1714 = vpop.permute.xlu0 %1713
        %1715 = vset.pattern.permute.xlu0 3
        %1716 = vperm.xlu0 %1715, %v177
        %v1717 = vpop.permute.xlu0 %1716
        %1718 = vset.pattern.permute.xlu0 3
        %1719 = vperm.xlu0 %1718, %v178
        %v1720 = vpop.permute.xlu0 %1719
        %1721 = vset.pattern.permute.xlu0 3
        %1722 = vperm.xlu0 %1721, %v179
        %v1723 = vpop.permute.xlu0 %1722
        %1724 = vset.pattern.permute.xlu0 3
        %1725 = vperm.xlu0 %1724, %v180
        %v1726 = vpop.permute.xlu0 %1725
        %1727 = vset.pattern.permute.xlu0 3
        %1728 = vperm.xlu0 %1727, %v181
        %v1729 = vpop.permute.xlu0 %1728
        %1730 = vset.pattern.permute.xlu0 3
        %1731 = vperm.xlu0 %1730, %v182
        %v1732 = vpop.permute.xlu0 %1731
        %1733 = vset.pattern.permute.xlu0 3
        %1734 = vperm.xlu0 %1733, %v183
        %v1735 = vpop.permute.xlu0 %1734
        %1736 = vset.pattern.permute.xlu0 3
        %1737 = vperm.xlu0 %1736, %v184
        %v1738 = vpop.permute.xlu0 %1737
        %1739 = vset.pattern.permute.xlu0 3
        %1740 = vperm.xlu0 %1739, %v185
        %v1741 = vpop.permute.xlu0 %1740
        %1742 = vset.pattern.permute.xlu0 3
        %1743 = vperm.xlu0 %1742, %v186
        %v1744 = vpop.permute.xlu0 %1743
        %vm1745 = vcmp.eq.s32.totalorder %v1699, %v188
        %vm1746 = vcmp.eq.s32.totalorder %v1702, %v188
        %vm1747 = vcmp.eq.s32.totalorder %v1705, %v188
        %vm1748 = vcmp.eq.s32.totalorder %v1708, %v188
        %vm1749 = vcmp.eq.s32.totalorder %v1711, %v188
        %vm1750 = vcmp.eq.s32.totalorder %v1714, %v188
        %vm1751 = vcmp.eq.s32.totalorder %v1717, %v188
        %vm1752 = vcmp.eq.s32.totalorder %v1720, %v188
        %vm1753 = vcmp.eq.s32.totalorder %v1723, %v188
        %vm1754 = vcmp.eq.s32.totalorder %v1726, %v188
        %vm1755 = vcmp.eq.s32.totalorder %v1729, %v188
        %vm1756 = vcmp.eq.s32.totalorder %v1732, %v188
        %vm1757 = vcmp.eq.s32.totalorder %v1735, %v188
        %vm1758 = vcmp.eq.s32.totalorder %v1738, %v188
        %vm1759 = vcmp.eq.s32.totalorder %v1741, %v188
        %vm1760 = vcmp.eq.s32.totalorder %v1744, %v188
        %v1761 = vsel %vm1745, 1, 0
        %v1762 = vsel %vm1746, 1, 0
        %v1763 = vsel %vm1747, 1, 0
        %v1764 = vsel %vm1748, 1, 0
        %v1765 = vsel %vm1749, 1, 0
        %v1766 = vsel %vm1750, 1, 0
        %v1767 = vsel %vm1751, 1, 0
        %v1768 = vsel %vm1752, 1, 0
        %v1769 = vsel %vm1753, 1, 0
        %v1770 = vsel %vm1754, 1, 0
        %v1771 = vsel %vm1755, 1, 0
        %v1772 = vsel %vm1756, 1, 0
        %v1773 = vsel %vm1757, 1, 0
        %v1774 = vsel %vm1758, 1, 0
        %v1775 = vsel %vm1759, 1, 0
        %v1776 = vsel %vm1760, 1, 0
        %v1777 = vcvt.s32.f32 %v1761
        %v1778 = vcvt.s32.f32 %v1762
        %v1779 = vcvt.s32.f32 %v1763
        %v1780 = vcvt.s32.f32 %v1764
        %v1781 = vcvt.s32.f32 %v1765
        %v1782 = vcvt.s32.f32 %v1766
        %v1783 = vcvt.s32.f32 %v1767
        %v1784 = vcvt.s32.f32 %v1768
        %v1785 = vcvt.s32.f32 %v1769
        %v1786 = vcvt.s32.f32 %v1770
        %v1787 = vcvt.s32.f32 %v1771
        %v1788 = vcvt.s32.f32 %v1772
        %v1789 = vcvt.s32.f32 %v1773
        %v1790 = vcvt.s32.f32 %v1774
        %v1791 = vcvt.s32.f32 %v1775
        %v1792 = vcvt.s32.f32 %v1776
        %v1794 = vsel %vm293, %v1777, 0
        %v1797 = vsel %vm293, %v1778, 0
        %v1800 = vsel %vm293, %v1779, 0
        %v1803 = vsel %vm293, %v1780, 0
        %v1806 = vsel %vm293, %v1781, 0
        %v1809 = vsel %vm293, %v1782, 0
        %v1812 = vsel %vm293, %v1783, 0
        %v1815 = vsel %vm293, %v1784, 0
        %v1818 = vsel %vm293, %v1785, 0
        %v1821 = vsel %vm293, %v1786, 0
        %v1824 = vsel %vm293, %v1787, 0
        %v1827 = vsel %vm293, %v1788, 0
        %v1830 = vsel %vm293, %v1789, 0
        %v1833 = vsel %vm293, %v1790, 0
        %v1836 = vsel %vm293, %v1791, 0
        %v1839 = vsel %vm293, %v1792, 0
        %1841 = vmatprep.subr.mxu0 0.0
        %1842 = vmatpush1.msra.mxu0 %v487
        %1843 = vmatprep.subr.mxu0 0.0
        %1844 = vmatpush1.msra.mxu0 %v488
        %1845 = vmatprep.subr.mxu0 0.0
        %1846 = vmatpush1.msra.mxu0 %v489
        %1847 = vmatprep.subr.mxu0 0.0
        %1848 = vmatpush1.msra.mxu0 %v490
        %1849 = vmatprep.subr.mxu0 0.0
        %1850 = vmatpush1.msra.mxu0 %v491
        %1851 = vmatprep.subr.mxu0 0.0
        %1852 = vmatpush1.msra.mxu0 %v492
        %1853 = vmatprep.subr.mxu0 0.0
        %1854 = vmatpush1.msra.mxu0 %v493
        %1855 = vmatprep.subr.mxu0 0.0
        %1856 = vmatpush1.msra.mxu0 %v494
        %1857 = vmatprep.subr.mxu0 0.0
        %1858 = vmatpush1.msra.mxu0 0.0
        %1859 = vmatprep.subr.mxu0 0.0
        %1860 = vmatpush1.msra.mxu0 0.0
        %1861 = vmatprep.subr.mxu0 0.0
        %1862 = vmatpush1.msra.mxu0 0.0
        %1863 = vmatprep.subr.mxu0 0.0
        %1864 = vmatpush1.msra.mxu0 0.0
        %1865 = vmatprep.subr.mxu0 0.0
        %1866 = vmatpush1.msra.mxu0 0.0
        %1867 = vmatprep.subr.mxu0 0.0
        %1868 = vmatpush1.msra.mxu0 0.0
        %1869 = vmatprep.subr.mxu0 0.0
        %1870 = vmatpush1.msra.mxu0 0.0
        %1871 = vmatprep.subr.mxu0 0.0
        %1872 = vmatpush1.msra.mxu0 0.0
        %1873 = vmatprep.subr.mxu0 0.0
        %1874 = vmatpush1.msra.mxu0 0.0
        %1875 = vmatprep.subr.mxu0 0.0
        %1876 = vmatpush1.msra.mxu0 0.0
        %1877 = vmatprep.subr.mxu0 0.0
        %1878 = vmatpush1.msra.mxu0 0.0
        %1879 = vmatprep.subr.mxu0 0.0
        %1880 = vmatpush1.msra.mxu0 0.0
        %1881 = vmatprep.subr.mxu0 0.0
        %1882 = vmatpush1.msra.mxu0 0.0
        %1883 = vmatprep.subr.mxu0 0.0
        %1884 = vmatpush1.msra.mxu0 0.0
        %1885 = vmatprep.subr.mxu0 0.0
        %1886 = vmatpush1.msra.mxu0 0.0
        %1887 = vmatprep.subr.mxu0 0.0
        %1888 = vmatpush1.msra.mxu0 0.0
        %1889 = vmatprep.subr.mxu0 0.0
        %1890 = vmatpush1.msra.mxu0 0.0
        %1891 = vmatprep.subr.mxu0 0.0
        %1892 = vmatpush1.msra.mxu0 0.0
        %1893 = vmatprep.subr.mxu0 0.0
        %1894 = vmatpush1.msra.mxu0 0.0
        %1895 = vmatprep.subr.mxu0 0.0
        %1896 = vmatpush1.msra.mxu0 0.0
        %1897 = vmatprep.subr.mxu0 0.0
        %1898 = vmatpush1.msra.mxu0 0.0
        %1899 = vmatprep.subr.mxu0 0.0
        %1900 = vmatpush1.msra.mxu0 0.0
        %1901 = vmatprep.subr.mxu0 0.0
        %1902 = vmatpush1.msra.mxu0 0.0
        %1903 = vmatprep.subr.mxu0 0.0
        %1904 = vmatpush1.msra.mxu0 0.0
        %1905 = vmatprep.mubr.f32.mxu0 0.0
        %1906 = vmatmul.mubr.f32.gmra.mrb[0].mxu0 %v1794
        %v1907 = vpop.f32.mrb[0].mxu0
        %v1908 = vadd.f32 0.0, %v1907
        %v1909 = vpop.f32.mrb[0].mxu0
        %1910 = vmatprep.mubr.f32.mxu0 0.0
        %1911 = vmatmul.mubr.f32.gmra.mrb[0].mxu0 %v1797
        %v1912 = vpop.f32.mrb[0].mxu0
        %v1913 = vadd.f32 0.0, %v1912
        %v1914 = vpop.f32.mrb[0].mxu0
        %1915 = vmatprep.mubr.f32.mxu0 0.0
        %1916 = vmatmul.mubr.f32.gmra.mrb[0].mxu0 %v1800
        %v1917 = vpop.f32.mrb[0].mxu0
        %v1918 = vadd.f32 0.0, %v1917
        %v1919 = vpop.f32.mrb[0].mxu0
        %1920 = vmatprep.mubr.f32.mxu0 0.0
        %1921 = vmatmul.mubr.f32.gmra.mrb[0].mxu0 %v1803
        %v1922 = vpop.f32.mrb[0].mxu0
        %v1923 = vadd.f32 0.0, %v1922
        %v1924 = vpop.f32.mrb[0].mxu0
        %1925 = vmatprep.mubr.f32.mxu0 0.0
        %1926 = vmatmul.mubr.f32.gmra.mrb[0].mxu0 %v1806
        %v1927 = vpop.f32.mrb[0].mxu0
        %v1928 = vadd.f32 0.0, %v1927
        %v1929 = vpop.f32.mrb[0].mxu0
        %1930 = vmatprep.mubr.f32.mxu0 0.0
        %1931 = vmatmul.mubr.f32.gmra.mrb[0].mxu0 %v1809
        %v1932 = vpop.f32.mrb[0].mxu0
        %v1933 = vadd.f32 0.0, %v1932
        %v1934 = vpop.f32.mrb[0].mxu0
        %1935 = vmatprep.mubr.f32.mxu0 0.0
        %1936 = vmatmul.mubr.f32.gmra.mrb[0].mxu0 %v1812
        %v1937 = vpop.f32.mrb[0].mxu0
        %v1938 = vadd.f32 0.0, %v1937
        %v1939 = vpop.f32.mrb[0].mxu0
        %1940 = vmatprep.mubr.f32.mxu0 0.0
        %1941 = vmatmul.mubr.f32.gmra.mrb[0].mxu0 %v1815
        %v1942 = vpop.f32.mrb[0].mxu0
        %v1943 = vadd.f32 0.0, %v1942
        %v1944 = vpop.f32.mrb[0].mxu0
        %1945 = vmatprep.mubr.f32.mxu0 0.0
        %1946 = vmatmul.mubr.f32.gmra.mrb[0].mxu0 %v1818
        %v1947 = vpop.f32.mrb[0].mxu0
        %v1948 = vadd.f32 0.0, %v1947
        %v1949 = vpop.f32.mrb[0].mxu0
        %1950 = vmatprep.mubr.f32.mxu0 0.0
        %1951 = vmatmul.mubr.f32.gmra.mrb[0].mxu0 %v1821
        %v1952 = vpop.f32.mrb[0].mxu0
        %v1953 = vadd.f32 0.0, %v1952
        %v1954 = vpop.f32.mrb[0].mxu0
        %1955 = vmatprep.mubr.f32.mxu0 0.0
        %1956 = vmatmul.mubr.f32.gmra.mrb[0].mxu0 %v1824
        %v1957 = vpop.f32.mrb[0].mxu0
        %v1958 = vadd.f32 0.0, %v1957
        %v1959 = vpop.f32.mrb[0].mxu0
        %1960 = vmatprep.mubr.f32.mxu0 0.0
        %1961 = vmatmul.mubr.f32.gmra.mrb[0].mxu0 %v1827
        %v1962 = vpop.f32.mrb[0].mxu0
        %v1963 = vadd.f32 0.0, %v1962
        %v1964 = vpop.f32.mrb[0].mxu0
        %1965 = vmatprep.mubr.f32.mxu0 0.0
        %1966 = vmatmul.mubr.f32.gmra.mrb[0].mxu0 %v1830
        %v1967 = vpop.f32.mrb[0].mxu0
        %v1968 = vadd.f32 0.0, %v1967
        %v1969 = vpop.f32.mrb[0].mxu0
        %1970 = vmatprep.mubr.f32.mxu0 0.0
        %1971 = vmatmul.mubr.f32.gmra.mrb[0].mxu0 %v1833
        %v1972 = vpop.f32.mrb[0].mxu0
        %v1973 = vadd.f32 0.0, %v1972
        %v1974 = vpop.f32.mrb[0].mxu0
        %1975 = vmatprep.mubr.f32.mxu0 0.0
        %1976 = vmatmul.mubr.f32.gmra.mrb[0].mxu0 %v1836
        %v1977 = vpop.f32.mrb[0].mxu0
        %v1978 = vadd.f32 0.0, %v1977
        %v1979 = vpop.f32.mrb[0].mxu0
        %1980 = vmatprep.mubr.f32.mxu0 0.0
        %1981 = vmatmul.mubr.f32.gmra.mrb[0].mxu0 %v1839
        %v1982 = vpop.f32.mrb[0].mxu0
        %v1983 = vadd.f32 0.0, %v1982
        %v1984 = vpop.f32.mrb[0].mxu0
        %1985 = vdwg.mxu0
        %v1986 = vmul.f32 %v409, %v1908
        %v1987 = vmul.f32 %v414, %v1913
        %v1988 = vmul.f32 %v419, %v1918
        %v1989 = vmul.f32 %v424, %v1923
        %v1990 = vmul.f32 %v429, %v1928
        %v1991 = vmul.f32 %v434, %v1933
        %v1992 = vmul.f32 %v439, %v1938
        %v1993 = vmul.f32 %v444, %v1943
        %v1994 = vmul.f32 %v449, %v1948
        %v1995 = vmul.f32 %v454, %v1953
        %v1996 = vmul.f32 %v459, %v1958
        %v1997 = vmul.f32 %v464, %v1963
        %v1998 = vmul.f32 %v469, %v1968
        %v1999 = vmul.f32 %v474, %v1973
        %v2000 = vmul.f32 %v479, %v1978
        %v2001 = vmul.f32 %v484, %v1983
        %2002 = vadd.xlane.f32.xlu0 %v1986
        %v2003 = vpop.xlane.xlu0 %2002
        %2004 = vadd.xlane.f32.xlu0 %v1987
        %v2005 = vpop.xlane.xlu0 %2004
        %2006 = vadd.xlane.f32.xlu0 %v1988
        %v2007 = vpop.xlane.xlu0 %2006
        %2008 = vadd.xlane.f32.xlu0 %v1989
        %v2009 = vpop.xlane.xlu0 %2008
        %2010 = vadd.xlane.f32.xlu0 %v1990
        %v2011 = vpop.xlane.xlu0 %2010
        %2012 = vadd.xlane.f32.xlu0 %v1991
        %v2013 = vpop.xlane.xlu0 %2012
        %2014 = vadd.xlane.f32.xlu0 %v1992
        %v2015 = vpop.xlane.xlu0 %2014
        %2016 = vadd.xlane.f32.xlu0 %v1993
        %v2017 = vpop.xlane.xlu0 %2016
        %2018 = vadd.xlane.f32.xlu0 %v1994
        %v2019 = vpop.xlane.xlu0 %2018
        %2020 = vadd.xlane.f32.xlu0 %v1995
        %v2021 = vpop.xlane.xlu0 %2020
        %2022 = vadd.xlane.f32.xlu0 %v1996
        %v2023 = vpop.xlane.xlu0 %2022
        %2024 = vadd.xlane.f32.xlu0 %v1997
        %v2025 = vpop.xlane.xlu0 %2024
        %2026 = vadd.xlane.f32.xlu0 %v1998
        %v2027 = vpop.xlane.xlu0 %2026
        %2028 = vadd.xlane.f32.xlu0 %v1999
        %v2029 = vpop.xlane.xlu0 %2028
        %2030 = vadd.xlane.f32.xlu0 %v2000
        %v2031 = vpop.xlane.xlu0 %2030
        %2032 = vadd.xlane.f32.xlu0 %v2001
        %v2033 = vpop.xlane.xlu0 %2032
        %v2034 = vsub.f32 0.0, %v2003
        %v2035 = vsub.f32 0.0, %v2005
        %v2036 = vsub.f32 0.0, %v2007
        %v2037 = vsub.f32 0.0, %v2009
        %v2038 = vsub.f32 0.0, %v2011
        %v2039 = vsub.f32 0.0, %v2013
        %v2040 = vsub.f32 0.0, %v2015
        %v2041 = vsub.f32 0.0, %v2017
        %v2042 = vsub.f32 0.0, %v2019
        %v2043 = vsub.f32 0.0, %v2021
        %v2044 = vsub.f32 0.0, %v2023
        %v2045 = vsub.f32 0.0, %v2025
        %v2046 = vsub.f32 0.0, %v2027
        %v2047 = vsub.f32 0.0, %v2029
        %v2048 = vsub.f32 0.0, %v2031
        %v2049 = vsub.f32 0.0, %v2033
        %v2050 = vmin.f32 %v2034, 0.0
        %v2051 = vmin.f32 %v2035, 0.0
        %v2052 = vmin.f32 %v2036, 0.0
        %v2053 = vmin.f32 %v2037, 0.0
        %v2054 = vmin.f32 %v2038, 0.0
        %v2055 = vmin.f32 %v2039, 0.0
        %v2056 = vmin.f32 %v2040, 0.0
        %v2057 = vmin.f32 %v2041, 0.0
        %v2058 = vmin.f32 %v2042, 0.0
        %v2059 = vmin.f32 %v2043, 0.0
        %v2060 = vmin.f32 %v2044, 0.0
        %v2061 = vmin.f32 %v2045, 0.0
        %v2062 = vmin.f32 %v2046, 0.0
        %v2063 = vmin.f32 %v2047, 0.0
        %v2064 = vmin.f32 %v2048, 0.0
        %v2065 = vmin.f32 %v2049, 0.0
        %v2066 = vand.u32 2147483647, %v2034
        %v2067 = vand.u32 2147483647, %v2035
        %v2068 = vand.u32 2147483647, %v2036
        %v2069 = vand.u32 2147483647, %v2037
        %v2070 = vand.u32 2147483647, %v2038
        %v2071 = vand.u32 2147483647, %v2039
        %v2072 = vand.u32 2147483647, %v2040
        %v2073 = vand.u32 2147483647, %v2041
        %v2074 = vand.u32 2147483647, %v2042
        %v2075 = vand.u32 2147483647, %v2043
        %v2076 = vand.u32 2147483647, %v2044
        %v2077 = vand.u32 2147483647, %v2045
        %v2078 = vand.u32 2147483647, %v2046
        %v2079 = vand.u32 2147483647, %v2047
        %v2080 = vand.u32 2147483647, %v2048
        %v2081 = vand.u32 2147483647, %v2049
        %v2082 = vsub.f32 0.0, %v2066
        %v2083 = vsub.f32 0.0, %v2067
        %v2084 = vsub.f32 0.0, %v2068
        %v2085 = vsub.f32 0.0, %v2069
        %v2086 = vsub.f32 0.0, %v2070
        %v2087 = vsub.f32 0.0, %v2071
        %v2088 = vsub.f32 0.0, %v2072
        %v2089 = vsub.f32 0.0, %v2073
        %v2090 = vsub.f32 0.0, %v2074
        %v2091 = vsub.f32 0.0, %v2075
        %v2092 = vsub.f32 0.0, %v2076
        %v2093 = vsub.f32 0.0, %v2077
        %v2094 = vsub.f32 0.0, %v2078
        %v2095 = vsub.f32 0.0, %v2079
        %v2096 = vsub.f32 0.0, %v2080
        %v2097 = vsub.f32 0.0, %v2081
        %v2098 = vmul.f32 %v2082, 1.442695
        %v2099 = vpow.pop %v2098
        %v2100 = vmul.f32 %v2083, 1.442695
        %v2101 = vpow.pop %v2100
        %v2102 = vmul.f32 %v2084, 1.442695
        %v2103 = vpow.pop %v2102
        %v2104 = vmul.f32 %v2085, 1.442695
        %v2105 = vpow.pop %v2104
        %v2106 = vmul.f32 %v2086, 1.442695
        %v2107 = vpow.pop %v2106
        %v2108 = vmul.f32 %v2087, 1.442695
        %v2109 = vpow.pop %v2108
        %v2110 = vmul.f32 %v2088, 1.442695
        %v2111 = vpow.pop %v2110
        %v2112 = vmul.f32 %v2089, 1.442695
        %v2113 = vpow.pop %v2112
        %v2114 = vmul.f32 %v2090, 1.442695
        %v2115 = vpow.pop %v2114
        %v2116 = vmul.f32 %v2091, 1.442695
        %v2117 = vpow.pop %v2116
        %v2118 = vmul.f32 %v2092, 1.442695
        %v2119 = vpow.pop %v2118
        %v2120 = vmul.f32 %v2093, 1.442695
        %v2121 = vpow.pop %v2120
        %v2122 = vmul.f32 %v2094, 1.442695
        %v2123 = vpow.pop %v2122
        %v2124 = vmul.f32 %v2095, 1.442695
        %v2125 = vpow.pop %v2124
        %v2126 = vmul.f32 %v2096, 1.442695
        %v2127 = vpow.pop %v2126
        %v2128 = vmul.f32 %v2097, 1.442695
        %v2129 = vpow.pop %v2128
        %v2130 = vadd.f32 %v2099, 1.0
        %v2131 = vlog2.pop %v2130
        %v2132 = vmul.f32 %v2131, 0.6931472
        %v2133 = vmul.f32 -0.5, %v2099
        %v2134 = vadd.f32 %v2133, 1.0
        %v2135 = vmul.f32 %v2134, %v2099
        %v2136 = vand.u32 2147483647, %v2099
        %vm2137 = vcmp.lt.f32.partialorder %v2136, 0.0004427343
        %v2138 = vsel %vm2137, %v2135, %v2132
        %v2139 = vadd.f32 %v2101, 1.0
        %v2140 = vlog2.pop %v2139
        %v2141 = vmul.f32 %v2140, 0.6931472
        %v2142 = vmul.f32 -0.5, %v2101
        %v2143 = vadd.f32 %v2142, 1.0
        %v2144 = vmul.f32 %v2143, %v2101
        %v2145 = vand.u32 2147483647, %v2101
        %vm2146 = vcmp.lt.f32.partialorder %v2145, 0.0004427343
        %v2147 = vsel %vm2146, %v2144, %v2141
        %v2148 = vadd.f32 %v2103, 1.0
        %v2149 = vlog2.pop %v2148
        %v2150 = vmul.f32 %v2149, 0.6931472
        %v2151 = vmul.f32 -0.5, %v2103
        %v2152 = vadd.f32 %v2151, 1.0
        %v2153 = vmul.f32 %v2152, %v2103
        %v2154 = vand.u32 2147483647, %v2103
        %vm2155 = vcmp.lt.f32.partialorder %v2154, 0.0004427343
        %v2156 = vsel %vm2155, %v2153, %v2150
        %v2157 = vadd.f32 %v2105, 1.0
        %v2158 = vlog2.pop %v2157
        %v2159 = vmul.f32 %v2158, 0.6931472
        %v2160 = vmul.f32 -0.5, %v2105
        %v2161 = vadd.f32 %v2160, 1.0
        %v2162 = vmul.f32 %v2161, %v2105
        %v2163 = vand.u32 2147483647, %v2105
        %vm2164 = vcmp.lt.f32.partialorder %v2163, 0.0004427343
        %v2165 = vsel %vm2164, %v2162, %v2159
        %v2166 = vadd.f32 %v2107, 1.0
        %v2167 = vlog2.pop %v2166
        %v2168 = vmul.f32 %v2167, 0.6931472
        %v2169 = vmul.f32 -0.5, %v2107
        %v2170 = vadd.f32 %v2169, 1.0
        %v2171 = vmul.f32 %v2170, %v2107
        %v2172 = vand.u32 2147483647, %v2107
        %vm2173 = vcmp.lt.f32.partialorder %v2172, 0.0004427343
        %v2174 = vsel %vm2173, %v2171, %v2168
        %v2175 = vadd.f32 %v2109, 1.0
        %v2176 = vlog2.pop %v2175
        %v2177 = vmul.f32 %v2176, 0.6931472
        %v2178 = vmul.f32 -0.5, %v2109
        %v2179 = vadd.f32 %v2178, 1.0
        %v2180 = vmul.f32 %v2179, %v2109
        %v2181 = vand.u32 2147483647, %v2109
        %vm2182 = vcmp.lt.f32.partialorder %v2181, 0.0004427343
        %v2183 = vsel %vm2182, %v2180, %v2177
        %v2184 = vadd.f32 %v2111, 1.0
        %v2185 = vlog2.pop %v2184
        %v2186 = vmul.f32 %v2185, 0.6931472
        %v2187 = vmul.f32 -0.5, %v2111
        %v2188 = vadd.f32 %v2187, 1.0
        %v2189 = vmul.f32 %v2188, %v2111
        %v2190 = vand.u32 2147483647, %v2111
        %vm2191 = vcmp.lt.f32.partialorder %v2190, 0.0004427343
        %v2192 = vsel %vm2191, %v2189, %v2186
        %v2193 = vadd.f32 %v2113, 1.0
        %v2194 = vlog2.pop %v2193
        %v2195 = vmul.f32 %v2194, 0.6931472
        %v2196 = vmul.f32 -0.5, %v2113
        %v2197 = vadd.f32 %v2196, 1.0
        %v2198 = vmul.f32 %v2197, %v2113
        %v2199 = vand.u32 2147483647, %v2113
        %vm2200 = vcmp.lt.f32.partialorder %v2199, 0.0004427343
        %v2201 = vsel %vm2200, %v2198, %v2195
        %v2202 = vadd.f32 %v2115, 1.0
        %v2203 = vlog2.pop %v2202
        %v2204 = vmul.f32 %v2203, 0.6931472
        %v2205 = vmul.f32 -0.5, %v2115
        %v2206 = vadd.f32 %v2205, 1.0
        %v2207 = vmul.f32 %v2206, %v2115
        %v2208 = vand.u32 2147483647, %v2115
        %vm2209 = vcmp.lt.f32.partialorder %v2208, 0.0004427343
        %v2210 = vsel %vm2209, %v2207, %v2204
        %v2211 = vadd.f32 %v2117, 1.0
        %v2212 = vlog2.pop %v2211
        %v2213 = vmul.f32 %v2212, 0.6931472
        %v2214 = vmul.f32 -0.5, %v2117
        %v2215 = vadd.f32 %v2214, 1.0
        %v2216 = vmul.f32 %v2215, %v2117
        %v2217 = vand.u32 2147483647, %v2117
        %vm2218 = vcmp.lt.f32.partialorder %v2217, 0.0004427343
        %v2219 = vsel %vm2218, %v2216, %v2213
        %v2220 = vadd.f32 %v2119, 1.0
        %v2221 = vlog2.pop %v2220
        %v2222 = vmul.f32 %v2221, 0.6931472
        %v2223 = vmul.f32 -0.5, %v2119
        %v2224 = vadd.f32 %v2223, 1.0
        %v2225 = vmul.f32 %v2224, %v2119
        %v2226 = vand.u32 2147483647, %v2119
        %vm2227 = vcmp.lt.f32.partialorder %v2226, 0.0004427343
        %v2228 = vsel %vm2227, %v2225, %v2222
        %v2229 = vadd.f32 %v2121, 1.0
        %v2230 = vlog2.pop %v2229
        %v2231 = vmul.f32 %v2230, 0.6931472
        %v2232 = vmul.f32 -0.5, %v2121
        %v2233 = vadd.f32 %v2232, 1.0
        %v2234 = vmul.f32 %v2233, %v2121
        %v2235 = vand.u32 2147483647, %v2121
        %vm2236 = vcmp.lt.f32.partialorder %v2235, 0.0004427343
        %v2237 = vsel %vm2236, %v2234, %v2231
        %v2238 = vadd.f32 %v2123, 1.0
        %v2239 = vlog2.pop %v2238
        %v2240 = vmul.f32 %v2239, 0.6931472
        %v2241 = vmul.f32 -0.5, %v2123
        %v2242 = vadd.f32 %v2241, 1.0
        %v2243 = vmul.f32 %v2242, %v2123
        %v2244 = vand.u32 2147483647, %v2123
        %vm2245 = vcmp.lt.f32.partialorder %v2244, 0.0004427343
        %v2246 = vsel %vm2245, %v2243, %v2240
        %v2247 = vadd.f32 %v2125, 1.0
        %v2248 = vlog2.pop %v2247
        %v2249 = vmul.f32 %v2248, 0.6931472
        %v2250 = vmul.f32 -0.5, %v2125
        %v2251 = vadd.f32 %v2250, 1.0
        %v2252 = vmul.f32 %v2251, %v2125
        %v2253 = vand.u32 2147483647, %v2125
        %vm2254 = vcmp.lt.f32.partialorder %v2253, 0.0004427343
        %v2255 = vsel %vm2254, %v2252, %v2249
        %v2256 = vadd.f32 %v2127, 1.0
        %v2257 = vlog2.pop %v2256
        %v2258 = vmul.f32 %v2257, 0.6931472
        %v2259 = vmul.f32 -0.5, %v2127
        %v2260 = vadd.f32 %v2259, 1.0
        %v2261 = vmul.f32 %v2260, %v2127
        %v2262 = vand.u32 2147483647, %v2127
        %vm2263 = vcmp.lt.f32.partialorder %v2262, 0.0004427343
        %v2264 = vsel %vm2263, %v2261, %v2258
        %v2265 = vadd.f32 %v2129, 1.0
        %v2266 = vlog2.pop %v2265
        %v2267 = vmul.f32 %v2266, 0.6931472
        %v2268 = vmul.f32 -0.5, %v2129
        %v2269 = vadd.f32 %v2268, 1.0
        %v2270 = vmul.f32 %v2269, %v2129
        %v2271 = vand.u32 2147483647, %v2129
        %vm2272 = vcmp.lt.f32.partialorder %v2271, 0.0004427343
        %v2273 = vsel %vm2272, %v2270, %v2267
        %v2274 = vsub.f32 %v2050, %v2138
        %v2275 = vsub.f32 %v2051, %v2147
        %v2276 = vsub.f32 %v2052, %v2156
        %v2277 = vsub.f32 %v2053, %v2165
        %v2278 = vsub.f32 %v2054, %v2174
        %v2279 = vsub.f32 %v2055, %v2183
        %v2280 = vsub.f32 %v2056, %v2192
        %v2281 = vsub.f32 %v2057, %v2201
        %v2282 = vsub.f32 %v2058, %v2210
        %v2283 = vsub.f32 %v2059, %v2219
        %v2284 = vsub.f32 %v2060, %v2228
        %v2285 = vsub.f32 %v2061, %v2237
        %v2286 = vsub.f32 %v2062, %v2246
        %v2287 = vsub.f32 %v2063, %v2255
        %v2288 = vsub.f32 %v2064, %v2264
        %v2289 = vsub.f32 %v2065, %v2273
        %v2290 = vadd.f32 %v1681, %v2274
        %v2291 = vadd.f32 %v1682, %v2275
        %v2292 = vadd.f32 %v1683, %v2276
        %v2293 = vadd.f32 %v1684, %v2277
        %v2294 = vadd.f32 %v1685, %v2278
        %v2295 = vadd.f32 %v1686, %v2279
        %v2296 = vadd.f32 %v1687, %v2280
        %v2297 = vadd.f32 %v1688, %v2281
        %v2298 = vadd.f32 %v1689, %v2282
        %v2299 = vadd.f32 %v1690, %v2283
        %v2300 = vadd.f32 %v1691, %v2284
        %v2301 = vadd.f32 %v1692, %v2285
        %v2302 = vadd.f32 %v1693, %v2286
        %v2303 = vadd.f32 %v1694, %v2287
        %v2304 = vadd.f32 %v1695, %v2288
        %v2305 = vadd.f32 %v1696, %v2289
        %2306 = vset.pattern.permute.xlu0 4
        %2307 = vperm.xlu0 %2306, %v171
        %v2308 = vpop.permute.xlu0 %2307
        %2309 = vset.pattern.permute.xlu0 4
        %2310 = vperm.xlu0 %2309, %v172
        %v2311 = vpop.permute.xlu0 %2310
        %2312 = vset.pattern.permute.xlu0 4
        %2313 = vperm.xlu0 %2312, %v173
        %v2314 = vpop.permute.xlu0 %2313
        %2315 = vset.pattern.permute.xlu0 4
        %2316 = vperm.xlu0 %2315, %v174
        %v2317 = vpop.permute.xlu0 %2316
        %2318 = vset.pattern.permute.xlu0 4
        %2319 = vperm.xlu0 %2318, %v175
        %v2320 = vpop.permute.xlu0 %2319
        %2321 = vset.pattern.permute.xlu0 4
        %2322 = vperm.xlu0 %2321, %v176
        %v2323 = vpop.permute.xlu0 %2322
        %2324 = vset.pattern.permute.xlu0 4
        %2325 = vperm.xlu0 %2324, %v177
        %v2326 = vpop.permute.xlu0 %2325
        %2327 = vset.pattern.permute.xlu0 4
        %2328 = vperm.xlu0 %2327, %v178
        %v2329 = vpop.permute.xlu0 %2328
        %2330 = vset.pattern.permute.xlu0 4
        %2331 = vperm.xlu0 %2330, %v179
        %v2332 = vpop.permute.xlu0 %2331
        %2333 = vset.pattern.permute.xlu0 4
        %2334 = vperm.xlu0 %2333, %v180
        %v2335 = vpop.permute.xlu0 %2334
        %2336 = vset.pattern.permute.xlu0 4
        %2337 = vperm.xlu0 %2336, %v181
        %v2338 = vpop.permute.xlu0 %2337
        %2339 = vset.pattern.permute.xlu0 4
        %2340 = vperm.xlu0 %2339, %v182
        %v2341 = vpop.permute.xlu0 %2340
        %2342 = vset.pattern.permute.xlu0 4
        %2343 = vperm.xlu0 %2342, %v183
        %v2344 = vpop.permute.xlu0 %2343
        %2345 = vset.pattern.permute.xlu0 4
        %2346 = vperm.xlu0 %2345, %v184
        %v2347 = vpop.permute.xlu0 %2346
        %2348 = vset.pattern.permute.xlu0 4
        %2349 = vperm.xlu0 %2348, %v185
        %v2350 = vpop.permute.xlu0 %2349
        %2351 = vset.pattern.permute.xlu0 4
        %2352 = vperm.xlu0 %2351, %v186
        %v2353 = vpop.permute.xlu0 %2352
        %vm2354 = vcmp.eq.s32.totalorder %v2308, %v188
        %vm2355 = vcmp.eq.s32.totalorder %v2311, %v188
        %vm2356 = vcmp.eq.s32.totalorder %v2314, %v188
        %vm2357 = vcmp.eq.s32.totalorder %v2317, %v188
        %vm2358 = vcmp.eq.s32.totalorder %v2320, %v188
        %vm2359 = vcmp.eq.s32.totalorder %v2323, %v188
        %vm2360 = vcmp.eq.s32.totalorder %v2326, %v188
        %vm2361 = vcmp.eq.s32.totalorder %v2329, %v188
        %vm2362 = vcmp.eq.s32.totalorder %v2332, %v188
        %vm2363 = vcmp.eq.s32.totalorder %v2335, %v188
        %vm2364 = vcmp.eq.s32.totalorder %v2338, %v188
        %vm2365 = vcmp.eq.s32.totalorder %v2341, %v188
        %vm2366 = vcmp.eq.s32.totalorder %v2344, %v188
        %vm2367 = vcmp.eq.s32.totalorder %v2347, %v188
        %vm2368 = vcmp.eq.s32.totalorder %v2350, %v188
        %vm2369 = vcmp.eq.s32.totalorder %v2353, %v188
        %v2370 = vsel %vm2354, 1, 0
        %v2371 = vsel %vm2355, 1, 0
        %v2372 = vsel %vm2356, 1, 0
        %v2373 = vsel %vm2357, 1, 0
        %v2374 = vsel %vm2358, 1, 0
        %v2375 = vsel %vm2359, 1, 0
        %v2376 = vsel %vm2360, 1, 0
        %v2377 = vsel %vm2361, 1, 0
        %v2378 = vsel %vm2362, 1, 0
        %v2379 = vsel %vm2363, 1, 0
        %v2380 = vsel %vm2364, 1, 0
        %v2381 = vsel %vm2365, 1, 0
        %v2382 = vsel %vm2366, 1, 0
        %v2383 = vsel %vm2367, 1, 0
        %v2384 = vsel %vm2368, 1, 0
        %v2385 = vsel %vm2369, 1, 0
        %v2386 = vcvt.s32.f32 %v2370
        %v2387 = vcvt.s32.f32 %v2371
        %v2388 = vcvt.s32.f32 %v2372
        %v2389 = vcvt.s32.f32 %v2373
        %v2390 = vcvt.s32.f32 %v2374
        %v2391 = vcvt.s32.f32 %v2375
        %v2392 = vcvt.s32.f32 %v2376
        %v2393 = vcvt.s32.f32 %v2377
        %v2394 = vcvt.s32.f32 %v2378
        %v2395 = vcvt.s32.f32 %v2379
        %v2396 = vcvt.s32.f32 %v2380
        %v2397 = vcvt.s32.f32 %v2381
        %v2398 = vcvt.s32.f32 %v2382
        %v2399 = vcvt.s32.f32 %v2383
        %v2400 = vcvt.s32.f32 %v2384
        %v2401 = vcvt.s32.f32 %v2385
        %v2403 = vsel %vm293, %v2386, 0
        %v2406 = vsel %vm293, %v2387, 0
        %v2409 = vsel %vm293, %v2388, 0
        %v2412 = vsel %vm293, %v2389, 0
        %v2415 = vsel %vm293, %v2390, 0
        %v2418 = vsel %vm293, %v2391, 0
        %v2421 = vsel %vm293, %v2392, 0
        %v2424 = vsel %vm293, %v2393, 0
        %v2427 = vsel %vm293, %v2394, 0
        %v2430 = vsel %vm293, %v2395, 0
        %v2433 = vsel %vm293, %v2396, 0
        %v2436 = vsel %vm293, %v2397, 0
        %v2439 = vsel %vm293, %v2398, 0
        %v2442 = vsel %vm293, %v2399, 0
        %v2445 = vsel %vm293, %v2400, 0
        %v2448 = vsel %vm293, %v2401, 0
        %2450 = vmatprep.subr.mxu0 0.0
        %2451 = vmatpush1.msra.mxu0 %v487
        %2452 = vmatprep.subr.mxu0 0.0
        %2453 = vmatpush1.msra.mxu0 %v488
        %2454 = vmatprep.subr.mxu0 0.0
        %2455 = vmatpush1.msra.mxu0 %v489
        %2456 = vmatprep.subr.mxu0 0.0
        %2457 = vmatpush1.msra.mxu0 %v490
        %2458 = vmatprep.subr.mxu0 0.0
        %2459 = vmatpush1.msra.mxu0 %v491
        %2460 = vmatprep.subr.mxu0 0.0
        %2461 = vmatpush1.msra.mxu0 %v492
        %2462 = vmatprep.subr.mxu0 0.0
        %2463 = vmatpush1.msra.mxu0 %v493
        %2464 = vmatprep.subr.mxu0 0.0
        %2465 = vmatpush1.msra.mxu0 %v494
        %2466 = vmatprep.subr.mxu0 0.0
        %2467 = vmatpush1.msra.mxu0 0.0
        %2468 = vmatprep.subr.mxu0 0.0
        %2469 = vmatpush1.msra.mxu0 0.0
        %2470 = vmatprep.subr.mxu0 0.0
        %2471 = vmatpush1.msra.mxu0 0.0
        %2472 = vmatprep.subr.mxu0 0.0
        %2473 = vmatpush1.msra.mxu0 0.0
        %2474 = vmatprep.subr.mxu0 0.0
        %2475 = vmatpush1.msra.mxu0 0.0
        %2476 = vmatprep.subr.mxu0 0.0
        %2477 = vmatpush1.msra.mxu0 0.0
        %2478 = vmatprep.subr.mxu0 0.0
        %2479 = vmatpush1.msra.mxu0 0.0
        %2480 = vmatprep.subr.mxu0 0.0
        %2481 = vmatpush1.msra.mxu0 0.0
        %2482 = vmatprep.subr.mxu0 0.0
        %2483 = vmatpush1.msra.mxu0 0.0
        %2484 = vmatprep.subr.mxu0 0.0
        %2485 = vmatpush1.msra.mxu0 0.0
        %2486 = vmatprep.subr.mxu0 0.0
        %2487 = vmatpush1.msra.mxu0 0.0
        %2488 = vmatprep.subr.mxu0 0.0
        %2489 = vmatpush1.msra.mxu0 0.0
        %2490 = vmatprep.subr.mxu0 0.0
        %2491 = vmatpush1.msra.mxu0 0.0
        %2492 = vmatprep.subr.mxu0 0.0
        %2493 = vmatpush1.msra.mxu0 0.0
        %2494 = vmatprep.subr.mxu0 0.0
        %2495 = vmatpush1.msra.mxu0 0.0
        %2496 = vmatprep.subr.mxu0 0.0
        %2497 = vmatpush1.msra.mxu0 0.0
        %2498 = vmatprep.subr.mxu0 0.0
        %2499 = vmatpush1.msra.mxu0 0.0
        %2500 = vmatprep.subr.mxu0 0.0
        %2501 = vmatpush1.msra.mxu0 0.0
        %2502 = vmatprep.subr.mxu0 0.0
        %2503 = vmatpush1.msra.mxu0 0.0
        %2504 = vmatprep.subr.mxu0 0.0
        %2505 = vmatpush1.msra.mxu0 0.0
        %2506 = vmatprep.subr.mxu0 0.0
        %2507 = vmatpush1.msra.mxu0 0.0
        %2508 = vmatprep.subr.mxu0 0.0
        %2509 = vmatpush1.msra.mxu0 0.0
        %2510 = vmatprep.subr.mxu0 0.0
        %2511 = vmatpush1.msra.mxu0 0.0
        %2512 = vmatprep.subr.mxu0 0.0
        %2513 = vmatpush1.msra.mxu0 0.0
        %2514 = vmatprep.mubr.f32.mxu0 0.0
        %2515 = vmatmul.mubr.f32.gmra.mrb[0].mxu0 %v2403
        %v2516 = vpop.f32.mrb[0].mxu0
        %v2517 = vadd.f32 0.0, %v2516
        %v2518 = vpop.f32.mrb[0].mxu0
        %2519 = vmatprep.mubr.f32.mxu0 0.0
        %2520 = vmatmul.mubr.f32.gmra.mrb[0].mxu0 %v2406
        %v2521 = vpop.f32.mrb[0].mxu0
        %v2522 = vadd.f32 0.0, %v2521
        %v2523 = vpop.f32.mrb[0].mxu0
        %2524 = vmatprep.mubr.f32.mxu0 0.0
        %2525 = vmatmul.mubr.f32.gmra.mrb[0].mxu0 %v2409
        %v2526 = vpop.f32.mrb[0].mxu0
        %v2527 = vadd.f32 0.0, %v2526
        %v2528 = vpop.f32.mrb[0].mxu0
        %2529 = vmatprep.mubr.f32.mxu0 0.0
        %2530 = vmatmul.mubr.f32.gmra.mrb[0].mxu0 %v2412
        %v2531 = vpop.f32.mrb[0].mxu0
        %v2532 = vadd.f32 0.0, %v2531
        %v2533 = vpop.f32.mrb[0].mxu0
        %2534 = vmatprep.mubr.f32.mxu0 0.0
        %2535 = vmatmul.mubr.f32.gmra.mrb[0].mxu0 %v2415
        %v2536 = vpop.f32.mrb[0].mxu0
        %v2537 = vadd.f32 0.0, %v2536
        %v2538 = vpop.f32.mrb[0].mxu0
        %2539 = vmatprep.mubr.f32.mxu0 0.0
        %2540 = vmatmul.mubr.f32.gmra.mrb[0].mxu0 %v2418
        %v2541 = vpop.f32.mrb[0].mxu0
        %v2542 = vadd.f32 0.0, %v2541
        %v2543 = vpop.f32.mrb[0].mxu0
        %2544 = vmatprep.mubr.f32.mxu0 0.0
        %2545 = vmatmul.mubr.f32.gmra.mrb[0].mxu0 %v2421
        %v2546 = vpop.f32.mrb[0].mxu0
        %v2547 = vadd.f32 0.0, %v2546
        %v2548 = vpop.f32.mrb[0].mxu0
        %2549 = vmatprep.mubr.f32.mxu0 0.0
        %2550 = vmatmul.mubr.f32.gmra.mrb[0].mxu0 %v2424
        %v2551 = vpop.f32.mrb[0].mxu0
        %v2552 = vadd.f32 0.0, %v2551
        %v2553 = vpop.f32.mrb[0].mxu0
        %2554 = vmatprep.mubr.f32.mxu0 0.0
        %2555 = vmatmul.mubr.f32.gmra.mrb[0].mxu0 %v2427
        %v2556 = vpop.f32.mrb[0].mxu0
        %v2557 = vadd.f32 0.0, %v2556
        %v2558 = vpop.f32.mrb[0].mxu0
        %2559 = vmatprep.mubr.f32.mxu0 0.0
        %2560 = vmatmul.mubr.f32.gmra.mrb[0].mxu0 %v2430
        %v2561 = vpop.f32.mrb[0].mxu0
        %v2562 = vadd.f32 0.0, %v2561
        %v2563 = vpop.f32.mrb[0].mxu0
        %2564 = vmatprep.mubr.f32.mxu0 0.0
        %2565 = vmatmul.mubr.f32.gmra.mrb[0].mxu0 %v2433
        %v2566 = vpop.f32.mrb[0].mxu0
        %v2567 = vadd.f32 0.0, %v2566
        %v2568 = vpop.f32.mrb[0].mxu0
        %2569 = vmatprep.mubr.f32.mxu0 0.0
        %2570 = vmatmul.mubr.f32.gmra.mrb[0].mxu0 %v2436
        %v2571 = vpop.f32.mrb[0].mxu0
        %v2572 = vadd.f32 0.0, %v2571
        %v2573 = vpop.f32.mrb[0].mxu0
        %2574 = vmatprep.mubr.f32.mxu0 0.0
        %2575 = vmatmul.mubr.f32.gmra.mrb[0].mxu0 %v2439
        %v2576 = vpop.f32.mrb[0].mxu0
        %v2577 = vadd.f32 0.0, %v2576
        %v2578 = vpop.f32.mrb[0].mxu0
        %2579 = vmatprep.mubr.f32.mxu0 0.0
        %2580 = vmatmul.mubr.f32.gmra.mrb[0].mxu0 %v2442
        %v2581 = vpop.f32.mrb[0].mxu0
        %v2582 = vadd.f32 0.0, %v2581
        %v2583 = vpop.f32.mrb[0].mxu0
        %2584 = vmatprep.mubr.f32.mxu0 0.0
        %2585 = vmatmul.mubr.f32.gmra.mrb[0].mxu0 %v2445
        %v2586 = vpop.f32.mrb[0].mxu0
        %v2587 = vadd.f32 0.0, %v2586
        %v2588 = vpop.f32.mrb[0].mxu0
        %2589 = vmatprep.mubr.f32.mxu0 0.0
        %2590 = vmatmul.mubr.f32.gmra.mrb[0].mxu0 %v2448
        %v2591 = vpop.f32.mrb[0].mxu0
        %v2592 = vadd.f32 0.0, %v2591
        %v2593 = vpop.f32.mrb[0].mxu0
        %2594 = vdwg.mxu0
        %v2595 = vmul.f32 %v409, %v2517
        %v2596 = vmul.f32 %v414, %v2522
        %v2597 = vmul.f32 %v419, %v2527
        %v2598 = vmul.f32 %v424, %v2532
        %v2599 = vmul.f32 %v429, %v2537
        %v2600 = vmul.f32 %v434, %v2542
        %v2601 = vmul.f32 %v439, %v2547
        %v2602 = vmul.f32 %v444, %v2552
        %v2603 = vmul.f32 %v449, %v2557
        %v2604 = vmul.f32 %v454, %v2562
        %v2605 = vmul.f32 %v459, %v2567
        %v2606 = vmul.f32 %v464, %v2572
        %v2607 = vmul.f32 %v469, %v2577
        %v2608 = vmul.f32 %v474, %v2582
        %v2609 = vmul.f32 %v479, %v2587
        %v2610 = vmul.f32 %v484, %v2592
        %2611 = vadd.xlane.f32.xlu0 %v2595
        %v2612 = vpop.xlane.xlu0 %2611
        %2613 = vadd.xlane.f32.xlu0 %v2596
        %v2614 = vpop.xlane.xlu0 %2613
        %2615 = vadd.xlane.f32.xlu0 %v2597
        %v2616 = vpop.xlane.xlu0 %2615
        %2617 = vadd.xlane.f32.xlu0 %v2598
        %v2618 = vpop.xlane.xlu0 %2617
        %2619 = vadd.xlane.f32.xlu0 %v2599
        %v2620 = vpop.xlane.xlu0 %2619
        %2621 = vadd.xlane.f32.xlu0 %v2600
        %v2622 = vpop.xlane.xlu0 %2621
        %2623 = vadd.xlane.f32.xlu0 %v2601
        %v2624 = vpop.xlane.xlu0 %2623
        %2625 = vadd.xlane.f32.xlu0 %v2602
        %v2626 = vpop.xlane.xlu0 %2625
        %2627 = vadd.xlane.f32.xlu0 %v2603
        %v2628 = vpop.xlane.xlu0 %2627
        %2629 = vadd.xlane.f32.xlu0 %v2604
        %v2630 = vpop.xlane.xlu0 %2629
        %2631 = vadd.xlane.f32.xlu0 %v2605
        %v2632 = vpop.xlane.xlu0 %2631
        %2633 = vadd.xlane.f32.xlu0 %v2606
        %v2634 = vpop.xlane.xlu0 %2633
        %2635 = vadd.xlane.f32.xlu0 %v2607
        %v2636 = vpop.xlane.xlu0 %2635
        %2637 = vadd.xlane.f32.xlu0 %v2608
        %v2638 = vpop.xlane.xlu0 %2637
        %2639 = vadd.xlane.f32.xlu0 %v2609
        %v2640 = vpop.xlane.xlu0 %2639
        %2641 = vadd.xlane.f32.xlu0 %v2610
        %v2642 = vpop.xlane.xlu0 %2641
        %v2643 = vsub.f32 0.0, %v2612
        %v2644 = vsub.f32 0.0, %v2614
        %v2645 = vsub.f32 0.0, %v2616
        %v2646 = vsub.f32 0.0, %v2618
        %v2647 = vsub.f32 0.0, %v2620
        %v2648 = vsub.f32 0.0, %v2622
        %v2649 = vsub.f32 0.0, %v2624
        %v2650 = vsub.f32 0.0, %v2626
        %v2651 = vsub.f32 0.0, %v2628
        %v2652 = vsub.f32 0.0, %v2630
        %v2653 = vsub.f32 0.0, %v2632
        %v2654 = vsub.f32 0.0, %v2634
        %v2655 = vsub.f32 0.0, %v2636
        %v2656 = vsub.f32 0.0, %v2638
        %v2657 = vsub.f32 0.0, %v2640
        %v2658 = vsub.f32 0.0, %v2642
        %v2659 = vmin.f32 %v2643, 0.0
        %v2660 = vmin.f32 %v2644, 0.0
        %v2661 = vmin.f32 %v2645, 0.0
        %v2662 = vmin.f32 %v2646, 0.0
        %v2663 = vmin.f32 %v2647, 0.0
        %v2664 = vmin.f32 %v2648, 0.0
        %v2665 = vmin.f32 %v2649, 0.0
        %v2666 = vmin.f32 %v2650, 0.0
        %v2667 = vmin.f32 %v2651, 0.0
        %v2668 = vmin.f32 %v2652, 0.0
        %v2669 = vmin.f32 %v2653, 0.0
        %v2670 = vmin.f32 %v2654, 0.0
        %v2671 = vmin.f32 %v2655, 0.0
        %v2672 = vmin.f32 %v2656, 0.0
        %v2673 = vmin.f32 %v2657, 0.0
        %v2674 = vmin.f32 %v2658, 0.0
        %v2675 = vand.u32 2147483647, %v2643
        %v2676 = vand.u32 2147483647, %v2644
        %v2677 = vand.u32 2147483647, %v2645
        %v2678 = vand.u32 2147483647, %v2646
        %v2679 = vand.u32 2147483647, %v2647
        %v2680 = vand.u32 2147483647, %v2648
        %v2681 = vand.u32 2147483647, %v2649
        %v2682 = vand.u32 2147483647, %v2650
        %v2683 = vand.u32 2147483647, %v2651
        %v2684 = vand.u32 2147483647, %v2652
        %v2685 = vand.u32 2147483647, %v2653
        %v2686 = vand.u32 2147483647, %v2654
        %v2687 = vand.u32 2147483647, %v2655
        %v2688 = vand.u32 2147483647, %v2656
        %v2689 = vand.u32 2147483647, %v2657
        %v2690 = vand.u32 2147483647, %v2658
        %v2691 = vsub.f32 0.0, %v2675
        %v2692 = vsub.f32 0.0, %v2676
        %v2693 = vsub.f32 0.0, %v2677
        %v2694 = vsub.f32 0.0, %v2678
        %v2695 = vsub.f32 0.0, %v2679
        %v2696 = vsub.f32 0.0, %v2680
        %v2697 = vsub.f32 0.0, %v2681
        %v2698 = vsub.f32 0.0, %v2682
        %v2699 = vsub.f32 0.0, %v2683
        %v2700 = vsub.f32 0.0, %v2684
        %v2701 = vsub.f32 0.0, %v2685
        %v2702 = vsub.f32 0.0, %v2686
        %v2703 = vsub.f32 0.0, %v2687
        %v2704 = vsub.f32 0.0, %v2688
        %v2705 = vsub.f32 0.0, %v2689
        %v2706 = vsub.f32 0.0, %v2690
        %v2707 = vmul.f32 %v2691, 1.442695
        %v2708 = vpow.pop %v2707
        %v2709 = vmul.f32 %v2692, 1.442695
        %v2710 = vpow.pop %v2709
        %v2711 = vmul.f32 %v2693, 1.442695
        %v2712 = vpow.pop %v2711
        %v2713 = vmul.f32 %v2694, 1.442695
        %v2714 = vpow.pop %v2713
        %v2715 = vmul.f32 %v2695, 1.442695
        %v2716 = vpow.pop %v2715
        %v2717 = vmul.f32 %v2696, 1.442695
        %v2718 = vpow.pop %v2717
        %v2719 = vmul.f32 %v2697, 1.442695
        %v2720 = vpow.pop %v2719
        %v2721 = vmul.f32 %v2698, 1.442695
        %v2722 = vpow.pop %v2721
        %v2723 = vmul.f32 %v2699, 1.442695
        %v2724 = vpow.pop %v2723
        %v2725 = vmul.f32 %v2700, 1.442695
        %v2726 = vpow.pop %v2725
        %v2727 = vmul.f32 %v2701, 1.442695
        %v2728 = vpow.pop %v2727
        %v2729 = vmul.f32 %v2702, 1.442695
        %v2730 = vpow.pop %v2729
        %v2731 = vmul.f32 %v2703, 1.442695
        %v2732 = vpow.pop %v2731
        %v2733 = vmul.f32 %v2704, 1.442695
        %v2734 = vpow.pop %v2733
        %v2735 = vmul.f32 %v2705, 1.442695
        %v2736 = vpow.pop %v2735
        %v2737 = vmul.f32 %v2706, 1.442695
        %v2738 = vpow.pop %v2737
        %v2739 = vadd.f32 %v2708, 1.0
        %v2740 = vlog2.pop %v2739
        %v2741 = vmul.f32 %v2740, 0.6931472
        %v2742 = vmul.f32 -0.5, %v2708
        %v2743 = vadd.f32 %v2742, 1.0
        %v2744 = vmul.f32 %v2743, %v2708
        %v2745 = vand.u32 2147483647, %v2708
        %vm2746 = vcmp.lt.f32.partialorder %v2745, 0.0004427343
        %v2747 = vsel %vm2746, %v2744, %v2741
        %v2748 = vadd.f32 %v2710, 1.0
        %v2749 = vlog2.pop %v2748
        %v2750 = vmul.f32 %v2749, 0.6931472
        %v2751 = vmul.f32 -0.5, %v2710
        %v2752 = vadd.f32 %v2751, 1.0
        %v2753 = vmul.f32 %v2752, %v2710
        %v2754 = vand.u32 2147483647, %v2710
        %vm2755 = vcmp.lt.f32.partialorder %v2754, 0.0004427343
        %v2756 = vsel %vm2755, %v2753, %v2750
        %v2757 = vadd.f32 %v2712, 1.0
        %v2758 = vlog2.pop %v2757
        %v2759 = vmul.f32 %v2758, 0.6931472
        %v2760 = vmul.f32 -0.5, %v2712
        %v2761 = vadd.f32 %v2760, 1.0
        %v2762 = vmul.f32 %v2761, %v2712
        %v2763 = vand.u32 2147483647, %v2712
        %vm2764 = vcmp.lt.f32.partialorder %v2763, 0.0004427343
        %v2765 = vsel %vm2764, %v2762, %v2759
        %v2766 = vadd.f32 %v2714, 1.0
        %v2767 = vlog2.pop %v2766
        %v2768 = vmul.f32 %v2767, 0.6931472
        %v2769 = vmul.f32 -0.5, %v2714
        %v2770 = vadd.f32 %v2769, 1.0
        %v2771 = vmul.f32 %v2770, %v2714
        %v2772 = vand.u32 2147483647, %v2714
        %vm2773 = vcmp.lt.f32.partialorder %v2772, 0.0004427343
        %v2774 = vsel %vm2773, %v2771, %v2768
        %v2775 = vadd.f32 %v2716, 1.0
        %v2776 = vlog2.pop %v2775
        %v2777 = vmul.f32 %v2776, 0.6931472
        %v2778 = vmul.f32 -0.5, %v2716
        %v2779 = vadd.f32 %v2778, 1.0
        %v2780 = vmul.f32 %v2779, %v2716
        %v2781 = vand.u32 2147483647, %v2716
        %vm2782 = vcmp.lt.f32.partialorder %v2781, 0.0004427343
        %v2783 = vsel %vm2782, %v2780, %v2777
        %v2784 = vadd.f32 %v2718, 1.0
        %v2785 = vlog2.pop %v2784
        %v2786 = vmul.f32 %v2785, 0.6931472
        %v2787 = vmul.f32 -0.5, %v2718
        %v2788 = vadd.f32 %v2787, 1.0
        %v2789 = vmul.f32 %v2788, %v2718
        %v2790 = vand.u32 2147483647, %v2718
        %vm2791 = vcmp.lt.f32.partialorder %v2790, 0.0004427343
        %v2792 = vsel %vm2791, %v2789, %v2786
        %v2793 = vadd.f32 %v2720, 1.0
        %v2794 = vlog2.pop %v2793
        %v2795 = vmul.f32 %v2794, 0.6931472
        %v2796 = vmul.f32 -0.5, %v2720
        %v2797 = vadd.f32 %v2796, 1.0
        %v2798 = vmul.f32 %v2797, %v2720
        %v2799 = vand.u32 2147483647, %v2720
        %vm2800 = vcmp.lt.f32.partialorder %v2799, 0.0004427343
        %v2801 = vsel %vm2800, %v2798, %v2795
        %v2802 = vadd.f32 %v2722, 1.0
        %v2803 = vlog2.pop %v2802
        %v2804 = vmul.f32 %v2803, 0.6931472
        %v2805 = vmul.f32 -0.5, %v2722
        %v2806 = vadd.f32 %v2805, 1.0
        %v2807 = vmul.f32 %v2806, %v2722
        %v2808 = vand.u32 2147483647, %v2722
        %vm2809 = vcmp.lt.f32.partialorder %v2808, 0.0004427343
        %v2810 = vsel %vm2809, %v2807, %v2804
        %v2811 = vadd.f32 %v2724, 1.0
        %v2812 = vlog2.pop %v2811
        %v2813 = vmul.f32 %v2812, 0.6931472
        %v2814 = vmul.f32 -0.5, %v2724
        %v2815 = vadd.f32 %v2814, 1.0
        %v2816 = vmul.f32 %v2815, %v2724
        %v2817 = vand.u32 2147483647, %v2724
        %vm2818 = vcmp.lt.f32.partialorder %v2817, 0.0004427343
        %v2819 = vsel %vm2818, %v2816, %v2813
        %v2820 = vadd.f32 %v2726, 1.0
        %v2821 = vlog2.pop %v2820
        %v2822 = vmul.f32 %v2821, 0.6931472
        %v2823 = vmul.f32 -0.5, %v2726
        %v2824 = vadd.f32 %v2823, 1.0
        %v2825 = vmul.f32 %v2824, %v2726
        %v2826 = vand.u32 2147483647, %v2726
        %vm2827 = vcmp.lt.f32.partialorder %v2826, 0.0004427343
        %v2828 = vsel %vm2827, %v2825, %v2822
        %v2829 = vadd.f32 %v2728, 1.0
        %v2830 = vlog2.pop %v2829
        %v2831 = vmul.f32 %v2830, 0.6931472
        %v2832 = vmul.f32 -0.5, %v2728
        %v2833 = vadd.f32 %v2832, 1.0
        %v2834 = vmul.f32 %v2833, %v2728
        %v2835 = vand.u32 2147483647, %v2728
        %vm2836 = vcmp.lt.f32.partialorder %v2835, 0.0004427343
        %v2837 = vsel %vm2836, %v2834, %v2831
        %v2838 = vadd.f32 %v2730, 1.0
        %v2839 = vlog2.pop %v2838
        %v2840 = vmul.f32 %v2839, 0.6931472
        %v2841 = vmul.f32 -0.5, %v2730
        %v2842 = vadd.f32 %v2841, 1.0
        %v2843 = vmul.f32 %v2842, %v2730
        %v2844 = vand.u32 2147483647, %v2730
        %vm2845 = vcmp.lt.f32.partialorder %v2844, 0.0004427343
        %v2846 = vsel %vm2845, %v2843, %v2840
        %v2847 = vadd.f32 %v2732, 1.0
        %v2848 = vlog2.pop %v2847
        %v2849 = vmul.f32 %v2848, 0.6931472
        %v2850 = vmul.f32 -0.5, %v2732
        %v2851 = vadd.f32 %v2850, 1.0
        %v2852 = vmul.f32 %v2851, %v2732
        %v2853 = vand.u32 2147483647, %v2732
        %vm2854 = vcmp.lt.f32.partialorder %v2853, 0.0004427343
        %v2855 = vsel %vm2854, %v2852, %v2849
        %v2856 = vadd.f32 %v2734, 1.0
        %v2857 = vlog2.pop %v2856
        %v2858 = vmul.f32 %v2857, 0.6931472
        %v2859 = vmul.f32 -0.5, %v2734
        %v2860 = vadd.f32 %v2859, 1.0
        %v2861 = vmul.f32 %v2860, %v2734
        %v2862 = vand.u32 2147483647, %v2734
        %vm2863 = vcmp.lt.f32.partialorder %v2862, 0.0004427343
        %v2864 = vsel %vm2863, %v2861, %v2858
        %v2865 = vadd.f32 %v2736, 1.0
        %v2866 = vlog2.pop %v2865
        %v2867 = vmul.f32 %v2866, 0.6931472
        %v2868 = vmul.f32 -0.5, %v2736
        %v2869 = vadd.f32 %v2868, 1.0
        %v2870 = vmul.f32 %v2869, %v2736
        %v2871 = vand.u32 2147483647, %v2736
        %vm2872 = vcmp.lt.f32.partialorder %v2871, 0.0004427343
        %v2873 = vsel %vm2872, %v2870, %v2867
        %v2874 = vadd.f32 %v2738, 1.0
        %v2875 = vlog2.pop %v2874
        %v2876 = vmul.f32 %v2875, 0.6931472
        %v2877 = vmul.f32 -0.5, %v2738
        %v2878 = vadd.f32 %v2877, 1.0
        %v2879 = vmul.f32 %v2878, %v2738
        %v2880 = vand.u32 2147483647, %v2738
        %vm2881 = vcmp.lt.f32.partialorder %v2880, 0.0004427343
        %v2882 = vsel %vm2881, %v2879, %v2876
        %v2883 = vsub.f32 %v2659, %v2747
        %v2884 = vsub.f32 %v2660, %v2756
        %v2885 = vsub.f32 %v2661, %v2765
        %v2886 = vsub.f32 %v2662, %v2774
        %v2887 = vsub.f32 %v2663, %v2783
        %v2888 = vsub.f32 %v2664, %v2792
        %v2889 = vsub.f32 %v2665, %v2801
        %v2890 = vsub.f32 %v2666, %v2810
        %v2891 = vsub.f32 %v2667, %v2819
        %v2892 = vsub.f32 %v2668, %v2828
        %v2893 = vsub.f32 %v2669, %v2837
        %v2894 = vsub.f32 %v2670, %v2846
        %v2895 = vsub.f32 %v2671, %v2855
        %v2896 = vsub.f32 %v2672, %v2864
        %v2897 = vsub.f32 %v2673, %v2873
        %v2898 = vsub.f32 %v2674, %v2882
        %v2899 = vadd.f32 %v2290, %v2883
        %v2900 = vadd.f32 %v2291, %v2884
        %v2901 = vadd.f32 %v2292, %v2885
        %v2902 = vadd.f32 %v2293, %v2886
        %v2903 = vadd.f32 %v2294, %v2887
        %v2904 = vadd.f32 %v2295, %v2888
        %v2905 = vadd.f32 %v2296, %v2889
        %v2906 = vadd.f32 %v2297, %v2890
        %v2907 = vadd.f32 %v2298, %v2891
        %v2908 = vadd.f32 %v2299, %v2892
        %v2909 = vadd.f32 %v2300, %v2893
        %v2910 = vadd.f32 %v2301, %v2894
        %v2911 = vadd.f32 %v2302, %v2895
        %v2912 = vadd.f32 %v2303, %v2896
        %v2913 = vadd.f32 %v2304, %v2897
        %v2914 = vadd.f32 %v2305, %v2898
        %s2915 = smul.u32 %s17, 128
        %v2916 = vlaneseq
        %v2917 = vshrl.u32 %v2916, 7
        %v2918 = vadd.s32 %v2917, 8
        %v2919 = vadd.s32 %v2917, 16
        %v2920 = vadd.s32 %v2917, 24
        %v2921 = vadd.s32 %v2917, 32
        %v2922 = vadd.s32 %v2917, 40
        %v2923 = vadd.s32 %v2917, 48
        %v2924 = vadd.s32 %v2917, 56
        %v2925 = vadd.s32 %v2917, 64
        %v2926 = vadd.s32 %v2917, 72
        %v2927 = vadd.s32 %v2917, 80
        %v2928 = vadd.s32 %v2917, 88
        %v2929 = vadd.s32 %v2917, 96
        %v2930 = vadd.s32 %v2917, 104
        %v2931 = vadd.s32 %v2917, 112
        %v2932 = vadd.s32 %v2917, 120
        %v2933 = vstv %s2915
        %v2934 = vadd.s32 %v2933, %v2917
        %v2935 = vadd.s32 %v2933, %v2918
        %v2936 = vadd.s32 %v2933, %v2919
        %v2937 = vadd.s32 %v2933, %v2920
        %v2938 = vadd.s32 %v2933, %v2921
        %v2939 = vadd.s32 %v2933, %v2922
        %v2940 = vadd.s32 %v2933, %v2923
        %v2941 = vadd.s32 %v2933, %v2924
        %v2942 = vadd.s32 %v2933, %v2925
        %v2943 = vadd.s32 %v2933, %v2926
        %v2944 = vadd.s32 %v2933, %v2927
        %v2945 = vadd.s32 %v2933, %v2928
        %v2946 = vadd.s32 %v2933, %v2929
        %v2947 = vadd.s32 %v2933, %v2930
        %v2948 = vadd.s32 %v2933, %v2931
        %v2949 = vadd.s32 %v2933, %v2932
        %vm2950 = vcmp.lt.s32.totalorder %v2934, 200
        %vm2951 = vcmp.lt.s32.totalorder %v2935, 200
        %vm2952 = vcmp.lt.s32.totalorder %v2936, 200
        %vm2953 = vcmp.lt.s32.totalorder %v2937, 200
        %vm2954 = vcmp.lt.s32.totalorder %v2938, 200
        %vm2955 = vcmp.lt.s32.totalorder %v2939, 200
        %vm2956 = vcmp.lt.s32.totalorder %v2940, 200
        %vm2957 = vcmp.lt.s32.totalorder %v2941, 200
        %vm2958 = vcmp.lt.s32.totalorder %v2942, 200
        %vm2959 = vcmp.lt.s32.totalorder %v2943, 200
        %vm2960 = vcmp.lt.s32.totalorder %v2944, 200
        %vm2961 = vcmp.lt.s32.totalorder %v2945, 200
        %vm2962 = vcmp.lt.s32.totalorder %v2946, 200
        %vm2963 = vcmp.lt.s32.totalorder %v2947, 200
        %vm2964 = vcmp.lt.s32.totalorder %v2948, 200
        %vm2965 = vcmp.lt.s32.totalorder %v2949, 200
        %v2966 = vsel %vm2950, %v2899, 0.0
        %v2967 = vsel %vm2951, %v2900, 0.0
        %v2968 = vsel %vm2952, %v2901, 0.0
        %v2969 = vsel %vm2953, %v2902, 0.0
        %v2970 = vsel %vm2954, %v2903, 0.0
        %v2971 = vsel %vm2955, %v2904, 0.0
        %v2972 = vsel %vm2956, %v2905, 0.0
        %v2973 = vsel %vm2957, %v2906, 0.0
        %v2974 = vsel %vm2958, %v2907, 0.0
        %v2975 = vsel %vm2959, %v2908, 0.0
        %v2976 = vsel %vm2960, %v2909, 0.0
        %v2977 = vsel %vm2961, %v2910, 0.0
        %v2978 = vsel %vm2962, %v2911, 0.0
        %v2979 = vsel %vm2963, %v2912, 0.0
        %v2980 = vsel %vm2964, %v2913, 0.0
        %v2981 = vsel %vm2965, %v2914, 0.0
        %vm2982 = vcmask 7168
        %v2983 = vsel %vm2982, %v2966, 0.0
        %v2984 = vsel %vm2982, %v2967, 0.0
        %v2985 = vadd.f32 %v2983, %v2984
        %v2986 = vsel %vm2982, %v2968, 0.0
        %v2987 = vadd.f32 %v2985, %v2986
        %v2988 = vsel %vm2982, %v2969, 0.0
        %v2989 = vadd.f32 %v2987, %v2988
        %v2990 = vsel %vm2982, %v2970, 0.0
        %v2991 = vadd.f32 %v2989, %v2990
        %v2992 = vsel %vm2982, %v2971, 0.0
        %v2993 = vadd.f32 %v2991, %v2992
        %v2994 = vsel %vm2982, %v2972, 0.0
        %v2995 = vadd.f32 %v2993, %v2994
        %v2996 = vsel %vm2982, %v2973, 0.0
        %v2997 = vadd.f32 %v2995, %v2996
        %v2998 = vsel %vm2982, %v2974, 0.0
        %v2999 = vadd.f32 %v2997, %v2998
        %v3000 = vsel %vm2982, %v2975, 0.0
        %v3001 = vadd.f32 %v2999, %v3000
        %v3002 = vsel %vm2982, %v2976, 0.0
        %v3003 = vadd.f32 %v3001, %v3002
        %v3004 = vsel %vm2982, %v2977, 0.0
        %v3005 = vadd.f32 %v3003, %v3004
        %v3006 = vsel %vm2982, %v2978, 0.0
        %v3007 = vadd.f32 %v3005, %v3006
        %v3008 = vsel %vm2982, %v2979, 0.0
        %v3009 = vadd.f32 %v3007, %v3008
        %v3010 = vsel %vm2982, %v2980, 0.0
        %v3011 = vadd.f32 %v3009, %v3010
        %v3012 = vsel %vm2982, %v2981, 0.0
        %v3013 = vadd.f32 %v3011, %v3012
        %3014 = vadd.xlane.f32.xlu0 %v3013
        %v3015 = vpop.xlane.xlu0 %3014
        %v3016 = vrot.slane %v3015, 4
        %v3017 = vadd.f32 %v3015, %v3016
        %v3018 = vrot.slane %v3017, 2
        %v3019 = vadd.f32 %v3017, %v3018
        %v3020 = vrot.slane %v3019, 1
        %v3021 = vadd.f32 %v3019, %v3020
        %s3022 = vtos %v3021
        %v3023 = vstv %s3022
        %3024 = vst [vmem:[%s164] sm:$0xff] %v3023
        %s3025 = sand.u32 %s93, 1
        %s3026 = scalar_lea.sflag [#allocation3], %s3025
        %s3027 = sand.u32 %s93, 1
        %s3028 = smul.addr %s3027, 8
        %s3029 = scalar_lea.vmem [#allocation2], %s3028
        // Predicated region
        $region33: #{tpu_custom_call.1} parent=31 // pred_check
          %p3030 = pneg %p103
        $region34: #{tpu_custom_call.1} parent=31 // pred_check_branch
          %3032 = sbr.rel (%p3030) target = $region36
        $region35: #{tpu_custom_call.1} parent=31 // pred_region
          %s3034 = ssub.s32 128, 128
          %3035 = vsyncadd %s3026, %s3034
          %s3036 = smul.addr %s17, 128
          %s3037 = scalar_lea.hbm %s3, %s3036
          %s3039 = sshll.u32 %s3029, 4
          %s3040 = int_to_ptr.vmem [resolvable:$true] %s3039
          %3042 = dma.vmem_to_hbm [thread:$0]  %s3040, 128, %s3037, %s3026
        $region36: #{tpu_custom_call.1} parent=31 // pred_fallthru
          _
      $region32: #{tpu_custom_call.1} parent=5 // pred_fallthru
        _
      %p3043 = scmp.le.s32.totalorder 2, %s12
      // Predicated region
      $region37: #{tpu_custom_call.1} parent=5 // pred_check
        %p3044 = pneg %p3043
      $region38: #{tpu_custom_call.1} parent=5 // pred_check_branch
        %3046 = sbr.rel (%p3044) target = $region40
      $region39: #{tpu_custom_call.1} parent=5 // pred_region
        %s3047 = ssub.s32 %s12, 2
        // Predicated region
        $region41: #{tpu_custom_call.1} parent=39 // pred_check
          %p3048 = pneg %p109
        $region42: #{tpu_custom_call.1} parent=39 // pred_check_branch
          %3050 = sbr.rel (%p3048) target = $region44
        $region43: #{tpu_custom_call.1} parent=39 // pred_region
          %s3051 = sand.u32 %s94, 1
          %s3052 = scalar_lea.sflag [#allocation3], %s3051
          %s3053 = sand.u32 %s94, 1
          %s3054 = smul.addr %s3053, 8
          %s3055 = scalar_lea.vmem [#allocation2], %s3054
          %3056 = dma.done %s3052, 128
        $region44: #{tpu_custom_call.1} parent=39 // pred_fallthru
          _
      $region40: #{tpu_custom_call.1} parent=5 // pred_fallthru
        _
    $region6: #{tpu_custom_call.1} parent=1 // loop_footer
      %s16 = sadd.s32 1, %s12
    $region7: #{tpu_custom_call.1} parent=1 // loop_footer_branch
      %11 = sbr.rel target = $region3
    $region8: #{tpu_custom_call.1} parent=1 // loop_exit
      _
    %3057 = vsyncpa [#allocation3], 1
    %s3058 = scalar_lea.sflag [#allocation3], 1
    %3059 = vsyncpa %s3058, 1

</llo_original>
